<compile_context>
chip_gen: v5e
topology: v5e:2x2
jax: 0.10.0
libtpu: 0.0.40
codegen_flags: <defaults>
</compile_context>

<pallas_src>
import jax
import jax.numpy as jnp
from jax.experimental import pallas as pl
from jax.experimental.pallas import tpu as pltpu

INPUT_SHAPE = 87
K_PAD = 128          # 87 zero-padded once (in prepare_params / x prep) to the lane boundary
FC1_DIMS = 1024
FC2_DIMS = 512
OUT_DIMS = 1
FC1_CHUNK = 256      # fc1/fc2 fusion chunk width


def _round_up(x, m):
    return ((x + m - 1) // m) * m


def _choose_tiles(B, block_b):
    """Balanced batch tiles: minimal padding waste, >=2 grid steps for B>=16 so a
    dual-TensorCore chip (v7x) can split the batch axis."""
    n = max(1, -(-B // block_b))
    if B >= 16:
        n = max(n, 2)
    tb = _round_up(-(-B // n), 8)
    b_pad = tb * n
    return tb, b_pad, n


def _critic_kernel(x_ref, w1_ref, b1_ref, w2_ref, b2_ref, w3_ref, b3_ref, o_ref):
    x = x_ref[...]                                              # (tb, 128) bf16
    acc = jnp.zeros((x.shape[0], FC2_DIMS), jnp.float32)
    # fc1 -> ReLU -> fc2 fused over FC1 chunks: never materializes the full
    # (tb, 1024) h1, cutting VMEM spill / vld-vst traffic.
    for c0 in range(0, FC1_DIMS, FC1_CHUNK):
        h1c = jnp.dot(x, w1_ref[:, c0:c0 + FC1_CHUNK],
                      preferred_element_type=jnp.float32)        # MXU, bf16 in / f32 acc
        h1c = jnp.maximum(h1c + b1_ref[:, c0:c0 + FC1_CHUNK], 0.0)  # VPU in f32 (v5e-safe)
        acc = acc + jnp.dot(h1c.astype(jnp.bfloat16), w2_ref[c0:c0 + FC1_CHUNK, :],
                            preferred_element_type=jnp.float32)
    h2 = jnp.maximum(acc + b2_ref[...], 0.0)
    # fc3 (512 -> 1): an N=1 MXU pass would waste 255/256 output lanes, so do it as
    # a VPU multiply + cross-lane (XLU) reduction; w3 is passed as a (1, 512) row.
    o_ref[...] = jnp.sum(h2 * w3_ref[...], axis=-1, keepdims=True) + b3_ref[...]


def prepare_params(params):
    """One-time (hoisted) parameter prep: pad W1's K dim 87->128, cast the matmul
    weights to bf16 (halves the dominant weight DMA and feeds the MXU its native
    dtype), reshape w3 to a (1, 512) row.  Biases stay f32 for VPU math."""
    w1, b1, w2, b2, w3, b3 = params
    w1p = jnp.pad(w1.astype(jnp.float32),
                  ((0, K_PAD - INPUT_SHAPE), (0, 0))).astype(jnp.bfloat16)
    return (w1p,
            b1.reshape(1, FC1_DIMS).astype(jnp.float32),
            w2.astype(jnp.bfloat16),
            b2.reshape(1, FC2_DIMS).astype(jnp.float32),
            w3.reshape(1, FC2_DIMS).astype(jnp.float32),
            b3.reshape(1, OUT_DIMS).astype(jnp.float32))


def _const_spec(shape):
    """Weights/biases use a constant index_map (same block every grid step, DMA'd
    once, VMEM-resident).  Request single buffering -- the pipeline's second copy
    of W1+W2 would be pure VMEM waste."""
    idx = lambda i: (0, 0)
    if hasattr(pl, "Buffered"):
        try:
            return pl.BlockSpec(shape, idx, pipeline_mode=pl.Buffered(1))
        except TypeError:
            pass
    return pl.BlockSpec(shape, idx)


def critic_forward(state, prepared_params, *, block_b=256, core_parallel=False):
    """state: (B, 87) float32 -> (B, 1) float32.  `prepared_params` from prepare_params()."""
    w1p, b1, w2, b2, w3r, b3 = prepared_params
    B = state.shape[0]
    tb, b_pad, n_steps = _choose_tiles(B, block_b)

    # Single fused per-call op on x: batch pad -> b_pad, features 87 -> 128, bf16
    # cast (the zero K-columns match W1's zero pad rows, contributing exactly 0).
    x = jnp.pad(state.astype(jnp.float32),
                ((0, b_pad - B), (0, K_PAD - INPUT_SHAPE))).astype(jnp.bfloat16)

    flops = (2 * b_pad * (K_PAD * FC1_DIMS + FC1_DIMS * FC2_DIMS + FC2_DIMS * OUT_DIMS)
             + b_pad * (FC1_DIMS + FC2_DIMS + OUT_DIMS))
    bytes_accessed = (2 * (b_pad * K_PAD + K_PAD * FC1_DIMS + FC1_DIMS * FC2_DIMS)
                      + 4 * (FC1_DIMS + 2 * FC2_DIMS + OUT_DIMS + b_pad * OUT_DIMS))

    # v7x: the batch axis can be split across the two TensorCores with
    # CORE_PARALLEL; plain "parallel" is the safe portable default (v5e/v6e: 1 TC).
    if core_parallel:
        sem = (getattr(pltpu, "CORE_PARALLEL", "parallel"),)
    else:
        sem = ("parallel",)

    out = pl.pallas_call(
        _critic_kernel,
        out_shape=jax.ShapeDtypeStruct((b_pad, OUT_DIMS), jnp.float32),
        grid=(n_steps,),
        in_specs=[
            pl.BlockSpec((tb, K_PAD), lambda i: (i, 0)),   # x tiles stream
            _const_spec((K_PAD, FC1_DIMS)),                # W1 (bf16, K-padded)
            _const_spec((1, FC1_DIMS)),                    # b1 (f32)
            _const_spec((FC1_DIMS, FC2_DIMS)),             # W2 (bf16)
            _const_spec((1, FC2_DIMS)),                    # b2 (f32)
            _const_spec((1, FC2_DIMS)),                    # w3 row (f32)
            _const_spec((1, OUT_DIMS)),                    # b3 (f32)
        ],
        out_specs=pl.BlockSpec((tb, OUT_DIMS), lambda i: (i, 0)),
        compiler_params=pltpu.CompilerParams(dimension_semantics=sem),
        cost_estimate=pl.CostEstimate(flops=flops, transcendentals=0,
                                      bytes_accessed=bytes_accessed),
    )(x, w1p, b1, w2, b2, w3r, b3)
    return out[:B]


def init_params(key):
    """Deterministic init mimicking torch.nn.Linear default:
       U(-1/sqrt(fan_in), 1/sqrt(fan_in)) for weights and biases."""
    def linear(key, fan_in, fan_out):
        kw, kb = jax.random.split(key)
        bound = 1.0 / jnp.sqrt(jnp.float32(fan_in))
        w = jax.random.uniform(kw, (fan_in, fan_out), jnp.float32, -bound, bound)
        b = jax.random.uniform(kb, (1, fan_out), jnp.float32, -bound, bound)
        return w, b

    k1, k2, k3 = jax.random.split(key, 3)
    w1, b1 = linear(k1, INPUT_SHAPE, FC1_DIMS)
    w2, b2 = linear(k2, FC1_DIMS, FC2_DIMS)
    w3, b3 = linear(k3, FC2_DIMS, OUT_DIMS)
    return (w1, b1, w2, b2, w3, b3)


def reference_forward_f32(state, params):
    w1, b1, w2, b2, w3, b3 = params
    h1 = jnp.maximum(state @ w1 + b1, 0.0)
    h2 = jnp.maximum(h1 @ w2 + b2, 0.0)
    return h2 @ w3 + b3


def reference_forward_bf16(state, params):
    """Matches the kernel's numerics: bf16 dot inputs, f32 accumulation/VPU math."""
    w1, b1, w2, b2, w3, b3 = params
    h1 = jnp.maximum(jnp.dot(state.astype(jnp.bfloat16), w1.astype(jnp.bfloat16),
                             preferred_element_type=jnp.float32) + b1, 0.0)
    h2 = jnp.maximum(jnp.dot(h1.astype(jnp.bfloat16), w2.astype(jnp.bfloat16),
                             preferred_element_type=jnp.float32) + b2, 0.0)
    return h2 @ w3 + b3


# TODO(synk): the Adam optimizer / training-step logic of the torch module has no
# Pallas forward-pass equivalent and is intentionally not implemented here.
# TODO(synk): for RL-style B<=8 call rates the ~1.25 MiB bf16 weight DMA dominates;
# a cross-call weight-resident scheme (P10 semaphore/VMEM futures) or batching
# several states per call would be the next lever.

if __name__ == "__main__":
    key = jax.random.PRNGKey(0)
    k_params, k_state1, k_state2 = jax.random.split(key, 3)

    raw_params = init_params(k_params)
    params = prepare_params(raw_params)   # hoisted: done once, not per forward call

    # Small batch (matches the module's typical RL usage): single grid step.
    batch = 8
    state = jax.random.normal(k_state1, (batch, INPUT_SHAPE), jnp.float32)
    out = jax.block_until_ready(critic_forward(state, params))
    assert out.shape == (batch, 1), out.shape
    assert jnp.allclose(out, reference_forward_bf16(state, raw_params),
                        atol=1e-2, rtol=1e-2), "mismatch vs bf16 reference (B=8)"
    assert jnp.allclose(out, reference_forward_f32(state, raw_params),
                        atol=5e-2, rtol=5e-2), "mismatch vs f32 reference (B=8)"

    # Larger, non-multiple batch: exercises balanced tiling (2 grid steps) + padding.
    batch2 = 200
    state2 = jax.random.normal(k_state2, (batch2, INPUT_SHAPE), jnp.float32)
    out2 = jax.block_until_ready(critic_forward(state2, params))
    assert out2.shape == (batch2, 1), out2.shape
    assert jnp.allclose(out2, reference_forward_bf16(state2, raw_params),
                        atol=1e-2, rtol=1e-2), "mismatch vs bf16 reference (B=200)"
    assert jnp.allclose(out2, reference_forward_f32(state2, raw_params),
                        atol=5e-2, rtol=5e-2), "mismatch vs f32 reference (B=200)"

    print("KERNEL_OK")
</pallas_src>

<mosaic_0001>
module attributes {stable_mosaic.version = 11 : i64} {
  func.func @_critic_kernel(%arg0: i32, %arg1: memref<8x128xbf16, #tpu.memory_space<vmem>>, %arg2: memref<128x1024xbf16, #tpu.memory_space<vmem>>, %arg3: memref<1x1024xf32, #tpu.memory_space<vmem>>, %arg4: memref<1024x512xbf16, #tpu.memory_space<vmem>>, %arg5: memref<1x512xf32, #tpu.memory_space<vmem>>, %arg6: memref<1x512xf32, #tpu.memory_space<vmem>>, %arg7: memref<1x1xf32, #tpu.memory_space<vmem>>, %arg8: memref<8x1xf32, #tpu.memory_space<vmem>>) attributes {dimension_semantics = [#tpu.dimension_semantics<parallel>], iteration_bounds = array<i64: 1>, scalar_prefetch = 0 : i64, scratch_operands = 0 : i64, tpu.core_type = #tpu.core_type<tc>, window_params = [{transform_indices = @transform_0, window_bounds = array<i64: 8, 128>}, {pipeline_mode = #tpu.pipeline_mode<synchronous>, transform_indices = @transform_1, window_bounds = array<i64: 128, 1024>}, {pipeline_mode = #tpu.pipeline_mode<synchronous>, transform_indices = @transform_2, window_bounds = array<i64: 1, 1024>}, {pipeline_mode = #tpu.pipeline_mode<synchronous>, transform_indices = @transform_3, window_bounds = array<i64: 1024, 512>}, {pipeline_mode = #tpu.pipeline_mode<synchronous>, transform_indices = @transform_4, window_bounds = array<i64: 1, 512>}, {pipeline_mode = #tpu.pipeline_mode<synchronous>, transform_indices = @transform_5, window_bounds = array<i64: 1, 512>}, {pipeline_mode = #tpu.pipeline_mode<synchronous>, transform_indices = @transform_6, window_bounds = array<i64: 1, 1>}, {transform_indices = @transform_7, window_bounds = array<i64: 8, 1>}]} {
    %c0 = arith.constant 0 : index
    %c0_0 = arith.constant 0 : index
    %0 = vector.load %arg1[%c0, %c0_0] : memref<8x128xbf16, #tpu.memory_space<vmem>>, vector<8x128xbf16>
    %cst = arith.constant 0.000000e+00 : f32
    %1 = vector.broadcast %cst : f32 to vector<8x512xf32>
    %c0_1 = arith.constant 0 : index
    %c0_2 = arith.constant 0 : index
    %2 = vector.load %arg2[%c0_1, %c0_2] : memref<128x1024xbf16, #tpu.memory_space<vmem>>, vector<128x256xbf16>
    %cst_3 = arith.constant dense<0.000000e+00> : vector<8x256xf32>
    %3 = tpu.matmul %0, %2, %cst_3 {dimension_numbers = #tpu.dot_dimension_numbers<[1], [0], [0], [1], [0, 0, 1, 1], [], []>} : vector<8x128xbf16>, vector<128x256xbf16>, vector<8x256xf32> -> vector<8x256xf32>
    %c0_4 = arith.constant 0 : index
    %c0_5 = arith.constant 0 : index
    %4 = vector.load %arg3[%c0_4, %c0_5] : memref<1x1024xf32, #tpu.memory_space<vmem>>, vector<1x256xf32>
    %5 = vector.broadcast %4 : vector<1x256xf32> to vector<8x256xf32>
    %6 = arith.addf %3, %5 : vector<8x256xf32>
    %cst_6 = arith.constant 0.000000e+00 : f32
    %7 = vector.broadcast %cst_6 : f32 to vector<8x256xf32>
    %8 = arith.maximumf %6, %7 : vector<8x256xf32>
    %9 = arith.truncf %8 : vector<8x256xf32> to vector<8x256xbf16>
    %c0_7 = arith.constant 0 : index
    %c0_8 = arith.constant 0 : index
    %10 = vector.load %arg4[%c0_7, %c0_8] : memref<1024x512xbf16, #tpu.memory_space<vmem>>, vector<256x512xbf16>
    %cst_9 = arith.constant dense<0.000000e+00> : vector<8x512xf32>
    %11 = tpu.matmul %9, %10, %cst_9 {dimension_numbers = #tpu.dot_dimension_numbers<[1], [0], [0], [1], [0, 0, 1, 1], [], []>} : vector<8x256xbf16>, vector<256x512xbf16>, vector<8x512xf32> -> vector<8x512xf32>
    %12 = arith.addf %1, %11 : vector<8x512xf32>
    %c0_10 = arith.constant 0 : index
    %c256 = arith.constant 256 : index
    %13 = vector.load %arg2[%c0_10, %c256] : memref<128x1024xbf16, #tpu.memory_space<vmem>>, vector<128x256xbf16>
    %cst_11 = arith.constant dense<0.000000e+00> : vector<8x256xf32>
    %14 = tpu.matmul %0, %13, %cst_11 {dimension_numbers = #tpu.dot_dimension_numbers<[1], [0], [0], [1], [0, 0, 1, 1], [], []>} : vector<8x128xbf16>, vector<128x256xbf16>, vector<8x256xf32> -> vector<8x256xf32>
    %c0_12 = arith.constant 0 : index
    %c256_13 = arith.constant 256 : index
    %15 = vector.load %arg3[%c0_12, %c256_13] : memref<1x1024xf32, #tpu.memory_space<vmem>>, vector<1x256xf32>
    %16 = vector.broadcast %15 : vector<1x256xf32> to vector<8x256xf32>
    %17 = arith.addf %14, %16 : vector<8x256xf32>
    %cst_14 = arith.constant 0.000000e+00 : f32
    %18 = vector.broadcast %cst_14 : f32 to vector<8x256xf32>
    %19 = arith.maximumf %17, %18 : vector<8x256xf32>
    %20 = arith.truncf %19 : vector<8x256xf32> to vector<8x256xbf16>
    %c256_15 = arith.constant 256 : index
    %c0_16 = arith.constant 0 : index
    %21 = vector.load %arg4[%c256_15, %c0_16] : memref<1024x512xbf16, #tpu.memory_space<vmem>>, vector<256x512xbf16>
    %cst_17 = arith.constant dense<0.000000e+00> : vector<8x512xf32>
    %22 = tpu.matmul %20, %21, %cst_17 {dimension_numbers = #tpu.dot_dimension_numbers<[1], [0], [0], [1], [0, 0, 1, 1], [], []>} : vector<8x256xbf16>, vector<256x512xbf16>, vector<8x512xf32> -> vector<8x512xf32>
    %23 = arith.addf %12, %22 : vector<8x512xf32>
    %c0_18 = arith.constant 0 : index
    %c512 = arith.constant 512 : index
    %24 = vector.load %arg2[%c0_18, %c512] : memref<128x1024xbf16, #tpu.memory_space<vmem>>, vector<128x256xbf16>
    %cst_19 = arith.constant dense<0.000000e+00> : vector<8x256xf32>
    %25 = tpu.matmul %0, %24, %cst_19 {dimension_numbers = #tpu.dot_dimension_numbers<[1], [0], [0], [1], [0, 0, 1, 1], [], []>} : vector<8x128xbf16>, vector<128x256xbf16>, vector<8x256xf32> -> vector<8x256xf32>
    %c0_20 = arith.constant 0 : index
    %c512_21 = arith.constant 512 : index
    %26 = vector.load %arg3[%c0_20, %c512_21] : memref<1x1024xf32, #tpu.memory_space<vmem>>, vector<1x256xf32>
    %27 = vector.broadcast %26 : vector<1x256xf32> to vector<8x256xf32>
    %28 = arith.addf %25, %27 : vector<8x256xf32>
    %cst_22 = arith.constant 0.000000e+00 : f32
    %29 = vector.broadcast %cst_22 : f32 to vector<8x256xf32>
    %30 = arith.maximumf %28, %29 : vector<8x256xf32>
    %31 = arith.truncf %30 : vector<8x256xf32> to vector<8x256xbf16>
    %c512_23 = arith.constant 512 : index
    %c0_24 = arith.constant 0 : index
    %32 = vector.load %arg4[%c512_23, %c0_24] : memref<1024x512xbf16, #tpu.memory_space<vmem>>, vector<256x512xbf16>
    %cst_25 = arith.constant dense<0.000000e+00> : vector<8x512xf32>
    %33 = tpu.matmul %31, %32, %cst_25 {dimension_numbers = #tpu.dot_dimension_numbers<[1], [0], [0], [1], [0, 0, 1, 1], [], []>} : vector<8x256xbf16>, vector<256x512xbf16>, vector<8x512xf32> -> vector<8x512xf32>
    %34 = arith.addf %23, %33 : vector<8x512xf32>
    %c0_26 = arith.constant 0 : index
    %c768 = arith.constant 768 : index
    %35 = vector.load %arg2[%c0_26, %c768] : memref<128x1024xbf16, #tpu.memory_space<vmem>>, vector<128x256xbf16>
    %cst_27 = arith.constant dense<0.000000e+00> : vector<8x256xf32>
    %36 = tpu.matmul %0, %35, %cst_27 {dimension_numbers = #tpu.dot_dimension_numbers<[1], [0], [0], [1], [0, 0, 1, 1], [], []>} : vector<8x128xbf16>, vector<128x256xbf16>, vector<8x256xf32> -> vector<8x256xf32>
    %c0_28 = arith.constant 0 : index
    %c768_29 = arith.constant 768 : index
    %37 = vector.load %arg3[%c0_28, %c768_29] : memref<1x1024xf32, #tpu.memory_space<vmem>>, vector<1x256xf32>
    %38 = vector.broadcast %37 : vector<1x256xf32> to vector<8x256xf32>
    %39 = arith.addf %36, %38 : vector<8x256xf32>
    %cst_30 = arith.constant 0.000000e+00 : f32
    %40 = vector.broadcast %cst_30 : f32 to vector<8x256xf32>
    %41 = arith.maximumf %39, %40 : vector<8x256xf32>
    %42 = arith.truncf %41 : vector<8x256xf32> to vector<8x256xbf16>
    %c768_31 = arith.constant 768 : index
    %c0_32 = arith.constant 0 : index
    %43 = vector.load %arg4[%c768_31, %c0_32] : memref<1024x512xbf16, #tpu.memory_space<vmem>>, vector<256x512xbf16>
    %cst_33 = arith.constant dense<0.000000e+00> : vector<8x512xf32>
    %44 = tpu.matmul %42, %43, %cst_33 {dimension_numbers = #tpu.dot_dimension_numbers<[1], [0], [0], [1], [0, 0, 1, 1], [], []>} : vector<8x256xbf16>, vector<256x512xbf16>, vector<8x512xf32> -> vector<8x512xf32>
    %45 = arith.addf %34, %44 : vector<8x512xf32>
    %c0_34 = arith.constant 0 : index
    %c0_35 = arith.constant 0 : index
    %46 = vector.load %arg5[%c0_34, %c0_35] : memref<1x512xf32, #tpu.memory_space<vmem>>, vector<1x512xf32>
    %47 = vector.broadcast %46 : vector<1x512xf32> to vector<8x512xf32>
    %48 = arith.addf %45, %47 : vector<8x512xf32>
    %cst_36 = arith.constant 0.000000e+00 : f32
    %49 = vector.broadcast %cst_36 : f32 to vector<8x512xf32>
    %50 = arith.maximumf %48, %49 : vector<8x512xf32>
    %c0_37 = arith.constant 0 : index
    %c0_38 = arith.constant 0 : index
    %51 = vector.load %arg6[%c0_37, %c0_38] : memref<1x512xf32, #tpu.memory_space<vmem>>, vector<1x512xf32>
    %52 = vector.broadcast %51 : vector<1x512xf32> to vector<8x512xf32>
    %53 = arith.mulf %50, %52 : vector<8x512xf32>
    %cst_39 = arith.constant dense<0.000000e+00> : vector<8xf32>
    %54 = vector.multi_reduction <add>, %53, %cst_39 [1] : vector<8x512xf32> to vector<8xf32>
    %55 = vector.shape_cast %54 : vector<8xf32> to vector<8x1xf32>
    %c0_40 = arith.constant 0 : index
    %c0_41 = arith.constant 0 : index
    %56 = vector.load %arg7[%c0_40, %c0_41] : memref<1x1xf32, #tpu.memory_space<vmem>>, vector<1x1xf32>
    %57 = vector.broadcast %56 : vector<1x1xf32> to vector<8x1xf32>
    %58 = arith.addf %55, %57 : vector<8x1xf32>
    %c0_42 = arith.constant 0 : index
    %c0_43 = arith.constant 0 : index
    %59 = vector.load %arg8[%c0_42, %c0_43] : memref<8x1xf32, #tpu.memory_space<vmem>>, vector<8x1xf32>
    tpu.vector_store %arg8[%c0_42, %c0_43], %58 {strides = array<i32>} : memref<8x1xf32, #tpu.memory_space<vmem>>, vector<8x1xf32>,
    return
  }
  func.func @transform_0(%arg0: i32) -> (i32, i32) {
    %c0_i32 = arith.constant 0 : i32
    %c0_i32_0 = arith.constant 0 : i32
    return %arg0, %c0_i32 : i32, i32
  }
  func.func @transform_1(%arg0: i32) -> (i32, i32) {
    %c0_i32 = arith.constant 0 : i32
    %c0_i32_0 = arith.constant 0 : i32
    %c0_i32_1 = arith.constant 0 : i32
    return %c0_i32, %c0_i32_0 : i32, i32
  }
  func.func @transform_2(%arg0: i32) -> (i32, i32) {
    %c0_i32 = arith.constant 0 : i32
    %c0_i32_0 = arith.constant 0 : i32
    %c0_i32_1 = arith.constant 0 : i32
    return %c0_i32, %c0_i32_0 : i32, i32
  }
  func.func @transform_3(%arg0: i32) -> (i32, i32) {
    %c0_i32 = arith.constant 0 : i32
    %c0_i32_0 = arith.constant 0 : i32
    %c0_i32_1 = arith.constant 0 : i32
    return %c0_i32, %c0_i32_0 : i32, i32
  }
  func.func @transform_4(%arg0: i32) -> (i32, i32) {
    %c0_i32 = arith.constant 0 : i32
    %c0_i32_0 = arith.constant 0 : i32
    %c0_i32_1 = arith.constant 0 : i32
    return %c0_i32, %c0_i32_0 : i32, i32
  }
  func.func @transform_5(%arg0: i32) -> (i32, i32) {
    %c0_i32 = arith.constant 0 : i32
    %c0_i32_0 = arith.constant 0 : i32
    %c0_i32_1 = arith.constant 0 : i32
    return %c0_i32, %c0_i32_0 : i32, i32
  }
  func.func @transform_6(%arg0: i32) -> (i32, i32) {
    %c0_i32 = arith.constant 0 : i32
    %c0_i32_0 = arith.constant 0 : i32
    %c0_i32_1 = arith.constant 0 : i32
    return %c0_i32, %c0_i32_0 : i32, i32
  }
  func.func @transform_7(%arg0: i32) -> (i32, i32) {
    %c0_i32 = arith.constant 0 : i32
    %c0_i32_0 = arith.constant 0 : i32
    return %arg0, %c0_i32 : i32, i32
  }
}

</mosaic_0001>

<llo_original>
// kernel: tpu_custom_call.1
$region0: #{tpu_custom_call.1}
  #allocation0 [shape = 'u32[]', space=smem, size = 0x4, offset = 0x4, fixed_abs, tag = 'smem constant byte address 0x4 - core index']
  #allocation1 [shape = 'u32[72,128]{1,0:T(1,128)}', space=vmem, size = 0x9000, scoped, tag = 'internal scratch']
  #allocation2 [shape = 'f32[1,1]{1,0:T(1,128)S(1)}', space=vmem, size = 0x200, scoped, tag = 'scoped memory for tpu_custom_call.1']
  %s0 = inlined_call_operand.hbm [shape: bf16[8,128], index: 0, kind: input, shape index: {}]
  %s1 = inlined_call_operand.hbm [shape: bf16[128,1024], index: 1, kind: input, shape index: {}]
  %s2 = inlined_call_operand.hbm [shape: f32[1,1024], index: 2, kind: input, shape index: {}]
  %s3 = inlined_call_operand.hbm [shape: bf16[1024,512], index: 3, kind: input, shape index: {}]
  %s4 = inlined_call_operand.vmem [shape: f32[1,512], index: 4, kind: input, shape index: {}]
  %s5 = inlined_call_operand.hbm [shape: f32[1,512], index: 5, kind: input, shape index: {}]
  %s6 = inlined_call_operand.<no memory space> [shape: f32[1,1], index: 6, kind: input, shape index: {}]
  %s7 = inlined_call_operand.vmem [shape: f32[8,1], index: 7, kind: output, shape index: {}]
  %s8 = sld [smem:[#allocation0]]
  $region58: #{tpu_custom_call.1} parent=0
    _
  %s10 = ssub.s32 1, %s8
  %s11 = scalar_select 0, %s10, %s8
  %v12 = vstv %s6
  %13 = vst [vmem:[#allocation2] sm:$0x1] %v12
  $region1: #{tpu_custom_call.1} parent=0
    #allocation3 [shape = 'u8[2048]{0}', space=vmem, size = 0x800, scoped, tag = 'input window, operand 0, single buffered']
    #allocation4 [shape = 's32[1]{0}', space=sflag, size = 0x4, scoped, tag = 'scoped memory for tpu_custom_call.1']
    #allocation5 [shape = 'u8[262144]{0}', space=vmem, size = 0x40000, scoped, tag = 'input window, operand 1, single buffered']
    #allocation6 [shape = 's32[1]{0}', space=sflag, size = 0x4, scoped, tag = 'scoped memory for tpu_custom_call.1']
    #allocation7 [shape = 'u8[4096]{0}', space=vmem, size = 0x1000, scoped, tag = 'input window, operand 2, single buffered']
    #allocation8 [shape = 'u8[1048576]{0}', space=vmem, size = 0x100000, scoped, tag = 'input window, operand 3, single buffered']
    #allocation9 [shape = 's32[1]{0}', space=sflag, size = 0x4, scoped, tag = 'scoped memory for tpu_custom_call.1']
    #allocation10 [shape = 'u8[2048]{0}', space=vmem, size = 0x800, scoped, tag = 'input window, operand 5, single buffered']
    %14 = vsyncpa [#allocation4], 0
    %15 = vsyncpa [#allocation6], 0
    %16 = vsyncpa [#allocation9], 0
    // Predicated region
    $region2: #{tpu_custom_call.1} parent=1 // pred_check
      _
    $region3: #{tpu_custom_call.1} parent=1 // pred_check_branch
      %18 = sbr.rel (0) target = $region5
    $region4: #{tpu_custom_call.1} parent=1 // pred_region
      %20 = vsyncadd [#allocation4], 0
      %s22 = sshll.u32 %s0, 4
      %s23 = int_to_ptr.hbm [resolvable:$true] %s22
      %s24 = sshll.u32 [#allocation3], 4
      %s25 = int_to_ptr.vmem [resolvable:$true] %s24
      %27 = dma.hbm_to_vmem [thread:$0]  %s23, 64, %s25, [#allocation4]
    $region5: #{tpu_custom_call.1} parent=1 // pred_fallthru
      _
    // Predicated region
    $region6: #{tpu_custom_call.1} parent=1 // pred_check
      _
    $region7: #{tpu_custom_call.1} parent=1 // pred_check_branch
      %29 = sbr.rel (0) target = $region9
    $region8: #{tpu_custom_call.1} parent=1 // pred_region
      %31 = vsyncadd [#allocation6], 0
      %s32 = sshll.u32 %s1, 4
      %s33 = int_to_ptr.hbm [resolvable:$true] %s32
      %s34 = sshll.u32 [#allocation5], 4
      %s35 = int_to_ptr.vmem [resolvable:$true] %s34
      %40 = dma.hbm_to_vmem [thread:$0]  %s33, 8192, %s35, [#allocation6], 512, 512, 32
    $region9: #{tpu_custom_call.1} parent=1 // pred_fallthru
      _
    // Predicated region
    $region10: #{tpu_custom_call.1} parent=1 // pred_check
      _
    $region11: #{tpu_custom_call.1} parent=1 // pred_check_branch
      %42 = sbr.rel (0) target = $region13
    $region12: #{tpu_custom_call.1} parent=1 // pred_region
      %44 = vsyncadd [#allocation6], 0
      %s46 = sshll.u32 %s2, 4
      %s47 = int_to_ptr.hbm [resolvable:$true] %s46
      %s48 = sshll.u32 [#allocation7], 4
      %s49 = int_to_ptr.vmem [resolvable:$true] %s48
      %51 = dma.hbm_to_vmem [thread:$0]  %s47, 128, %s49, [#allocation6]
    $region13: #{tpu_custom_call.1} parent=1 // pred_fallthru
      _
    // Predicated region
    $region14: #{tpu_custom_call.1} parent=1 // pred_check
      _
    $region15: #{tpu_custom_call.1} parent=1 // pred_check_branch
      %53 = sbr.rel (0) target = $region17
    $region16: #{tpu_custom_call.1} parent=1 // pred_region
      %55 = vsyncadd [#allocation9], 0
      %s56 = sshll.u32 %s3, 4
      %s57 = int_to_ptr.hbm [resolvable:$true] %s56
      %s58 = sshll.u32 [#allocation8], 4
      %s59 = int_to_ptr.vmem [resolvable:$true] %s58
      %64 = dma.hbm_to_vmem [thread:$0]  %s57, 32768, %s59, [#allocation9], 256, 256, 16
    $region17: #{tpu_custom_call.1} parent=1 // pred_fallthru
      _
    // Predicated region
    $region18: #{tpu_custom_call.1} parent=1 // pred_check
      _
    $region19: #{tpu_custom_call.1} parent=1 // pred_check_branch
      %66 = sbr.rel (0) target = $region21
    $region20: #{tpu_custom_call.1} parent=1 // pred_region
      _
    $region21: #{tpu_custom_call.1} parent=1 // pred_fallthru
      _
    // Predicated region
    $region22: #{tpu_custom_call.1} parent=1 // pred_check
      _
    $region23: #{tpu_custom_call.1} parent=1 // pred_check_branch
      %68 = sbr.rel (0) target = $region25
    $region24: #{tpu_custom_call.1} parent=1 // pred_region
      %70 = vsyncadd [#allocation9], 0
      %s72 = sshll.u32 %s5, 4
      %s73 = int_to_ptr.hbm [resolvable:$true] %s72
      %s74 = sshll.u32 [#allocation10], 4
      %s75 = int_to_ptr.vmem [resolvable:$true] %s74
      %77 = dma.hbm_to_vmem [thread:$0]  %s73, 64, %s75, [#allocation9]
    $region25: #{tpu_custom_call.1} parent=1 // pred_fallthru
      _
    // Predicated region
    $region26: #{tpu_custom_call.1} parent=1 // pred_check
      _
    $region27: #{tpu_custom_call.1} parent=1 // pred_check_branch
      %79 = sbr.rel (0) target = $region29
    $region28: #{tpu_custom_call.1} parent=1 // pred_region
      _
    $region29: #{tpu_custom_call.1} parent=1 // pred_fallthru
      _
    // Predicated region
    $region30: #{tpu_custom_call.1} parent=1 // pred_check
      _
    $region31: #{tpu_custom_call.1} parent=1 // pred_check_branch
      %81 = sbr.rel (0) target = $region33
    $region32: #{tpu_custom_call.1} parent=1 // pred_region
      %83 = dma.done [#allocation4], 64
    $region33: #{tpu_custom_call.1} parent=1 // pred_fallthru
      _
    // Predicated region
    $region34: #{tpu_custom_call.1} parent=1 // pred_check
      _
    $region35: #{tpu_custom_call.1} parent=1 // pred_check_branch
      %85 = sbr.rel (0) target = $region37
    $region36: #{tpu_custom_call.1} parent=1 // pred_region
      %87 = dma.done [#allocation6], 8192
    $region37: #{tpu_custom_call.1} parent=1 // pred_fallthru
      _
    // Predicated region
    $region38: #{tpu_custom_call.1} parent=1 // pred_check
      _
    $region39: #{tpu_custom_call.1} parent=1 // pred_check_branch
      %89 = sbr.rel (0) target = $region41
    $region40: #{tpu_custom_call.1} parent=1 // pred_region
      %91 = dma.done [#allocation6], 128
    $region41: #{tpu_custom_call.1} parent=1 // pred_fallthru
      _
    // Predicated region
    $region42: #{tpu_custom_call.1} parent=1 // pred_check
      _
    $region43: #{tpu_custom_call.1} parent=1 // pred_check_branch
      %93 = sbr.rel (0) target = $region45
    $region44: #{tpu_custom_call.1} parent=1 // pred_region
      %95 = dma.done [#allocation9], 32768
    $region45: #{tpu_custom_call.1} parent=1 // pred_fallthru
      _
    // Predicated region
    $region46: #{tpu_custom_call.1} parent=1 // pred_check
      _
    $region47: #{tpu_custom_call.1} parent=1 // pred_check_branch
      %97 = sbr.rel (0) target = $region49
    $region48: #{tpu_custom_call.1} parent=1 // pred_region
      %99 = dma.done [#allocation9], 64
    $region49: #{tpu_custom_call.1} parent=1 // pred_fallthru
      _
    %v100 = vld [vmem:[#allocation3] sm:$0xf]
    %v101 = vld [vmem:[#allocation5] sm:$0xff]
    %v102 = vld [vmem:[#allocation5 + $0x20] sm:$0xff]
    %v103 = vld [vmem:[#allocation5 + $0x40] sm:$0xff]
    %v104 = vld [vmem:[#allocation5 + $0x60] sm:$0xff]
    %v105 = vld [vmem:[#allocation5 + $0x80] sm:$0xff]
    %v106 = vld [vmem:[#allocation5 + $0xa0] sm:$0xff]
    %v107 = vld [vmem:[#allocation5 + $0xc0] sm:$0xff]
    %v108 = vld [vmem:[#allocation5 + $0xe0] sm:$0xff]
    %v109 = vld [vmem:[#allocation5 + $0x100] sm:$0xff]
    %v110 = vld [vmem:[#allocation5 + $0x120] sm:$0xff]
    %v111 = vld [vmem:[#allocation5 + $0x140] sm:$0xff]
    %v112 = vld [vmem:[#allocation5 + $0x160] sm:$0xff]
    %v113 = vld [vmem:[#allocation5 + $0x180] sm:$0xff]
    %v114 = vld [vmem:[#allocation5 + $0x1a0] sm:$0xff]
    %v115 = vld [vmem:[#allocation5 + $0x1c0] sm:$0xff]
    %v116 = vld [vmem:[#allocation5 + $0x1e0] sm:$0xff]
    %v117 = vld [vmem:[#allocation7] sm:$0x3]
    %v119 = vperm.slane %v117, 0
    %v120 = vperm.slane %v117, 1
    %v139 = vunpack.c.l.b16 %v101
    %v140 = vunpack.c.h.b16 %v101
    %v141 = vunpack.c.l.b16 %v102
    %v142 = vunpack.c.h.b16 %v102
    %v143 = vunpack.c.l.b16 %v103
    %v144 = vunpack.c.h.b16 %v103
    %v145 = vunpack.c.l.b16 %v104
    %v146 = vunpack.c.h.b16 %v104
    %v147 = vunpack.c.l.b16 %v105
    %v148 = vunpack.c.h.b16 %v105
    %v149 = vunpack.c.l.b16 %v106
    %v150 = vunpack.c.h.b16 %v106
    %v151 = vunpack.c.l.b16 %v107
    %v152 = vunpack.c.h.b16 %v107
    %v153 = vunpack.c.l.b16 %v108
    %v154 = vunpack.c.h.b16 %v108
    %v155 = vunpack.c.l.b16 %v109
    %v156 = vunpack.c.h.b16 %v109
    %v157 = vunpack.c.l.b16 %v110
    %v158 = vunpack.c.h.b16 %v110
    %v159 = vunpack.c.l.b16 %v111
    %v160 = vunpack.c.h.b16 %v111
    %v161 = vunpack.c.l.b16 %v112
    %v162 = vunpack.c.h.b16 %v112
    %v163 = vunpack.c.l.b16 %v113
    %v164 = vunpack.c.h.b16 %v113
    %v165 = vunpack.c.l.b16 %v114
    %v166 = vunpack.c.h.b16 %v114
    %v167 = vunpack.c.l.b16 %v115
    %v168 = vunpack.c.h.b16 %v115
    %v169 = vunpack.c.l.b16 %v116
    %v170 = vunpack.c.h.b16 %v116
    %v171 = vpack.c.b16 %v141, %v139
    %v172 = vpack.c.b16 %v142, %v140
    %v173 = vpack.c.b16 %v145, %v143
    %v174 = vpack.c.b16 %v146, %v144
    %v175 = vpack.c.b16 %v149, %v147
    %v176 = vpack.c.b16 %v150, %v148
    %v177 = vpack.c.b16 %v153, %v151
    %v178 = vpack.c.b16 %v154, %v152
    %v179 = vpack.c.b16 %v157, %v155
    %v180 = vpack.c.b16 %v158, %v156
    %v181 = vpack.c.b16 %v161, %v159
    %v182 = vpack.c.b16 %v162, %v160
    %v183 = vpack.c.b16 %v165, %v163
    %v184 = vpack.c.b16 %v166, %v164
    %v185 = vpack.c.b16 %v169, %v167
    %v186 = vpack.c.b16 %v170, %v168
    %203 = vmatpush.bf16.msra.mxu0 %v185
    %204 = vmatpush.bf16.msra.mxu0 %v183
    %205 = vmatpush.bf16.msra.mxu0 %v181
    %206 = vmatpush.bf16.msra.mxu0 %v179
    %207 = vmatpush.bf16.msra.mxu0 %v177
    %208 = vmatpush.bf16.msra.mxu0 %v175
    %209 = vmatpush.bf16.msra.mxu0 %v173
    %210 = vmatpush.bf16.msra.mxu0 %v171
    %211 = vmatmul.bf16.gmra.mxu0 %v100
    %v212 = vpop.f32.mrf.mxu0
    %v213 = vadd.f32 %v119, %v212
    %v214 = vpop.f32.mrf.mxu0
    %215 = vdwg.mxu0
    %216 = vmatpush.bf16.msra.mxu0 %v186
    %217 = vmatpush.bf16.msra.mxu0 %v184
    %218 = vmatpush.bf16.msra.mxu0 %v182
    %219 = vmatpush.bf16.msra.mxu0 %v180
    %220 = vmatpush.bf16.msra.mxu0 %v178
    %221 = vmatpush.bf16.msra.mxu0 %v176
    %222 = vmatpush.bf16.msra.mxu0 %v174
    %223 = vmatpush.bf16.msra.mxu0 %v172
    %224 = vmatmul.bf16.gmra.mxu0 %v100
    %v225 = vpop.f32.mrf.mxu0
    %v226 = vadd.f32 %v120, %v225
    %v227 = vpop.f32.mrf.mxu0
    %228 = vdwg.mxu0
    %v229 = vmax.f32 %v213, 0.0
    %v230 = vmax.f32 %v226, 0.0
    %v231 = vpack.c.bf16 %v229, %v229
    %v232 = vpack.c.bf16 %v230, %v230
    %v233 = vld [vmem:[#allocation8] sm:$0xff]
    %v234 = vld [vmem:[#allocation8 + $0x8] sm:$0xff]
    %v235 = vld [vmem:[#allocation8 + $0x10] sm:$0xff]
    %v236 = vld [vmem:[#allocation8 + $0x18] sm:$0xff]
    %v237 = vld [vmem:[#allocation8 + $0x20] sm:$0xff]
    %v238 = vld [vmem:[#allocation8 + $0x28] sm:$0xff]
    %v239 = vld [vmem:[#allocation8 + $0x30] sm:$0xff]
    %v240 = vld [vmem:[#allocation8 + $0x38] sm:$0xff]
    %v241 = vld [vmem:[#allocation8 + $0x40] sm:$0xff]
    %v242 = vld [vmem:[#allocation8 + $0x48] sm:$0xff]
    %v243 = vld [vmem:[#allocation8 + $0x50] sm:$0xff]
    %v244 = vld [vmem:[#allocation8 + $0x58] sm:$0xff]
    %v245 = vld [vmem:[#allocation8 + $0x60] sm:$0xff]
    %v246 = vld [vmem:[#allocation8 + $0x68] sm:$0xff]
    %v247 = vld [vmem:[#allocation8 + $0x70] sm:$0xff]
    %v248 = vld [vmem:[#allocation8 + $0x78] sm:$0xff]
    %v249 = vld [vmem:[#allocation8 + $0x80] sm:$0xff]
    %v250 = vld [vmem:[#allocation8 + $0x88] sm:$0xff]
    %v251 = vld [vmem:[#allocation8 + $0x90] sm:$0xff]
    %v252 = vld [vmem:[#allocation8 + $0x98] sm:$0xff]
    %v253 = vld [vmem:[#allocation8 + $0xa0] sm:$0xff]
    %v254 = vld [vmem:[#allocation8 + $0xa8] sm:$0xff]
    %v255 = vld [vmem:[#allocation8 + $0xb0] sm:$0xff]
    %v256 = vld [vmem:[#allocation8 + $0xb8] sm:$0xff]
    %v257 = vld [vmem:[#allocation8 + $0xc0] sm:$0xff]
    %v258 = vld [vmem:[#allocation8 + $0xc8] sm:$0xff]
    %v259 = vld [vmem:[#allocation8 + $0xd0] sm:$0xff]
    %v260 = vld [vmem:[#allocation8 + $0xd8] sm:$0xff]
    %v261 = vld [vmem:[#allocation8 + $0xe0] sm:$0xff]
    %v262 = vld [vmem:[#allocation8 + $0xe8] sm:$0xff]
    %v263 = vld [vmem:[#allocation8 + $0xf0] sm:$0xff]
    %v264 = vld [vmem:[#allocation8 + $0xf8] sm:$0xff]
    %v265 = vld [vmem:[#allocation8 + $0x100] sm:$0xff]
    %v266 = vld [vmem:[#allocation8 + $0x108] sm:$0xff]
    %v267 = vld [vmem:[#allocation8 + $0x110] sm:$0xff]
    %v268 = vld [vmem:[#allocation8 + $0x118] sm:$0xff]
    %v269 = vld [vmem:[#allocation8 + $0x120] sm:$0xff]
    %v270 = vld [vmem:[#allocation8 + $0x128] sm:$0xff]
    %v271 = vld [vmem:[#allocation8 + $0x130] sm:$0xff]
    %v272 = vld [vmem:[#allocation8 + $0x138] sm:$0xff]
    %v273 = vld [vmem:[#allocation8 + $0x140] sm:$0xff]
    %v274 = vld [vmem:[#allocation8 + $0x148] sm:$0xff]
    %v275 = vld [vmem:[#allocation8 + $0x150] sm:$0xff]
    %v276 = vld [vmem:[#allocation8 + $0x158] sm:$0xff]
    %v277 = vld [vmem:[#allocation8 + $0x160] sm:$0xff]
    %v278 = vld [vmem:[#allocation8 + $0x168] sm:$0xff]
    %v279 = vld [vmem:[#allocation8 + $0x170] sm:$0xff]
    %v280 = vld [vmem:[#allocation8 + $0x178] sm:$0xff]
    %v281 = vld [vmem:[#allocation8 + $0x180] sm:$0xff]
    %v282 = vld [vmem:[#allocation8 + $0x188] sm:$0xff]
    %v283 = vld [vmem:[#allocation8 + $0x190] sm:$0xff]
    %v284 = vld [vmem:[#allocation8 + $0x198] sm:$0xff]
    %v285 = vld [vmem:[#allocation8 + $0x1a0] sm:$0xff]
    %v286 = vld [vmem:[#allocation8 + $0x1a8] sm:$0xff]
    %v287 = vld [vmem:[#allocation8 + $0x1b0] sm:$0xff]
    %v288 = vld [vmem:[#allocation8 + $0x1b8] sm:$0xff]
    %v289 = vld [vmem:[#allocation8 + $0x1c0] sm:$0xff]
    %v290 = vld [vmem:[#allocation8 + $0x1c8] sm:$0xff]
    %v291 = vld [vmem:[#allocation8 + $0x1d0] sm:$0xff]
    %v292 = vld [vmem:[#allocation8 + $0x1d8] sm:$0xff]
    %v293 = vld [vmem:[#allocation8 + $0x1e0] sm:$0xff]
    %v294 = vld [vmem:[#allocation8 + $0x1e8] sm:$0xff]
    %v295 = vld [vmem:[#allocation8 + $0x1f0] sm:$0xff]
    %v296 = vld [vmem:[#allocation8 + $0x1f8] sm:$0xff]
    %v297 = vld [vmem:[#allocation5 + $0x8] sm:$0xff]
    %v298 = vld [vmem:[#allocation5 + $0x28] sm:$0xff]
    %v299 = vld [vmem:[#allocation5 + $0x48] sm:$0xff]
    %v300 = vld [vmem:[#allocation5 + $0x68] sm:$0xff]
    %v301 = vld [vmem:[#allocation5 + $0x88] sm:$0xff]
    %v302 = vld [vmem:[#allocation5 + $0xa8] sm:$0xff]
    %v303 = vld [vmem:[#allocation5 + $0xc8] sm:$0xff]
    %v304 = vld [vmem:[#allocation5 + $0xe8] sm:$0xff]
    %v305 = vld [vmem:[#allocation5 + $0x108] sm:$0xff]
    %v306 = vld [vmem:[#allocation5 + $0x128] sm:$0xff]
    %v307 = vld [vmem:[#allocation5 + $0x148] sm:$0xff]
    %v308 = vld [vmem:[#allocation5 + $0x168] sm:$0xff]
    %v309 = vld [vmem:[#allocation5 + $0x188] sm:$0xff]
    %v310 = vld [vmem:[#allocation5 + $0x1a8] sm:$0xff]
    %v311 = vld [vmem:[#allocation5 + $0x1c8] sm:$0xff]
    %v312 = vld [vmem:[#allocation5 + $0x1e8] sm:$0xff]
    %v313 = vld [vmem:[#allocation7 + $0x2] sm:$0x3]
    %v315 = vperm.slane %v313, 0
    %v316 = vperm.slane %v313, 1
    %v335 = vunpack.c.l.b16 %v297
    %v336 = vunpack.c.h.b16 %v297
    %v337 = vunpack.c.l.b16 %v298
    %v338 = vunpack.c.h.b16 %v298
    %v339 = vunpack.c.l.b16 %v299
    %v340 = vunpack.c.h.b16 %v299
    %v341 = vunpack.c.l.b16 %v300
    %v342 = vunpack.c.h.b16 %v300
    %v343 = vunpack.c.l.b16 %v301
    %v344 = vunpack.c.h.b16 %v301
    %v345 = vunpack.c.l.b16 %v302
    %v346 = vunpack.c.h.b16 %v302
    %v347 = vunpack.c.l.b16 %v303
    %v348 = vunpack.c.h.b16 %v303
    %v349 = vunpack.c.l.b16 %v304
    %v350 = vunpack.c.h.b16 %v304
    %v351 = vunpack.c.l.b16 %v305
    %v352 = vunpack.c.h.b16 %v305
    %v353 = vunpack.c.l.b16 %v306
    %v354 = vunpack.c.h.b16 %v306
    %v355 = vunpack.c.l.b16 %v307
    %v356 = vunpack.c.h.b16 %v307
    %v357 = vunpack.c.l.b16 %v308
    %v358 = vunpack.c.h.b16 %v308
    %v359 = vunpack.c.l.b16 %v309
    %v360 = vunpack.c.h.b16 %v309
    %v361 = vunpack.c.l.b16 %v310
    %v362 = vunpack.c.h.b16 %v310
    %v363 = vunpack.c.l.b16 %v311
    %v364 = vunpack.c.h.b16 %v311
    %v365 = vunpack.c.l.b16 %v312
    %v366 = vunpack.c.h.b16 %v312
    %v367 = vpack.c.b16 %v337, %v335
    %v368 = vpack.c.b16 %v338, %v336
    %v369 = vpack.c.b16 %v341, %v339
    %v370 = vpack.c.b16 %v342, %v340
    %v371 = vpack.c.b16 %v345, %v343
    %v372 = vpack.c.b16 %v346, %v344
    %v373 = vpack.c.b16 %v349, %v347
    %v374 = vpack.c.b16 %v350, %v348
    %v375 = vpack.c.b16 %v353, %v351
    %v376 = vpack.c.b16 %v354, %v352
    %v377 = vpack.c.b16 %v357, %v355
    %v378 = vpack.c.b16 %v358, %v356
    %v379 = vpack.c.b16 %v361, %v359
    %v380 = vpack.c.b16 %v362, %v360
    %v381 = vpack.c.b16 %v365, %v363
    %v382 = vpack.c.b16 %v366, %v364
    %399 = vmatpush.bf16.msra.mxu0 %v381
    %400 = vmatpush.bf16.msra.mxu0 %v379
    %401 = vmatpush.bf16.msra.mxu0 %v377
    %402 = vmatpush.bf16.msra.mxu0 %v375
    %403 = vmatpush.bf16.msra.mxu0 %v373
    %404 = vmatpush.bf16.msra.mxu0 %v371
    %405 = vmatpush.bf16.msra.mxu0 %v369
    %406 = vmatpush.bf16.msra.mxu0 %v367
    %407 = vmatmul.bf16.gmra.mxu0 %v100
    %v408 = vpop.f32.mrf.mxu0
    %v409 = vadd.f32 %v315, %v408
    %v410 = vpop.f32.mrf.mxu0
    %411 = vdwg.mxu0
    %412 = vmatpush.bf16.msra.mxu0 %v382
    %413 = vmatpush.bf16.msra.mxu0 %v380
    %414 = vmatpush.bf16.msra.mxu0 %v378
    %415 = vmatpush.bf16.msra.mxu0 %v376
    %416 = vmatpush.bf16.msra.mxu0 %v374
    %417 = vmatpush.bf16.msra.mxu0 %v372
    %418 = vmatpush.bf16.msra.mxu0 %v370
    %419 = vmatpush.bf16.msra.mxu0 %v368
    %420 = vmatmul.bf16.gmra.mxu0 %v100
    %v421 = vpop.f32.mrf.mxu0
    %v422 = vadd.f32 %v316, %v421
    %v423 = vpop.f32.mrf.mxu0
    %424 = vdwg.mxu0
    %v425 = vmax.f32 %v409, 0.0
    %v426 = vmax.f32 %v422, 0.0
    %v427 = vpack.c.bf16 %v425, %v425
    %v428 = vpack.c.bf16 %v426, %v426
    %v429 = vld [vmem:[#allocation8 + $0x200] sm:$0xff]
    %v430 = vld [vmem:[#allocation8 + $0x208] sm:$0xff]
    %v431 = vld [vmem:[#allocation8 + $0x210] sm:$0xff]
    %v432 = vld [vmem:[#allocation8 + $0x218] sm:$0xff]
    %v433 = vld [vmem:[#allocation8 + $0x220] sm:$0xff]
    %v434 = vld [vmem:[#allocation8 + $0x228] sm:$0xff]
    %v435 = vld [vmem:[#allocation8 + $0x230] sm:$0xff]
    %v436 = vld [vmem:[#allocation8 + $0x238] sm:$0xff]
    %v437 = vld [vmem:[#allocation8 + $0x240] sm:$0xff]
    %v438 = vld [vmem:[#allocation8 + $0x248] sm:$0xff]
    %v439 = vld [vmem:[#allocation8 + $0x250] sm:$0xff]
    %v440 = vld [vmem:[#allocation8 + $0x258] sm:$0xff]
    %v441 = vld [vmem:[#allocation8 + $0x260] sm:$0xff]
    %v442 = vld [vmem:[#allocation8 + $0x268] sm:$0xff]
    %v443 = vld [vmem:[#allocation8 + $0x270] sm:$0xff]
    %v444 = vld [vmem:[#allocation8 + $0x278] sm:$0xff]
    %v445 = vld [vmem:[#allocation8 + $0x280] sm:$0xff]
    %v446 = vld [vmem:[#allocation8 + $0x288] sm:$0xff]
    %v447 = vld [vmem:[#allocation8 + $0x290] sm:$0xff]
    %v448 = vld [vmem:[#allocation8 + $0x298] sm:$0xff]
    %v449 = vld [vmem:[#allocation8 + $0x2a0] sm:$0xff]
    %v450 = vld [vmem:[#allocation8 + $0x2a8] sm:$0xff]
    %v451 = vld [vmem:[#allocation8 + $0x2b0] sm:$0xff]
    %v452 = vld [vmem:[#allocation8 + $0x2b8] sm:$0xff]
    %v453 = vld [vmem:[#allocation8 + $0x2c0] sm:$0xff]
    %v454 = vld [vmem:[#allocation8 + $0x2c8] sm:$0xff]
    %v455 = vld [vmem:[#allocation8 + $0x2d0] sm:$0xff]
    %v456 = vld [vmem:[#allocation8 + $0x2d8] sm:$0xff]
    %v457 = vld [vmem:[#allocation8 + $0x2e0] sm:$0xff]
    %v458 = vld [vmem:[#allocation8 + $0x2e8] sm:$0xff]
    %v459 = vld [vmem:[#allocation8 + $0x2f0] sm:$0xff]
    %v460 = vld [vmem:[#allocation8 + $0x2f8] sm:$0xff]
    %v461 = vld [vmem:[#allocation8 + $0x300] sm:$0xff]
    %v462 = vld [vmem:[#allocation8 + $0x308] sm:$0xff]
    %v463 = vld [vmem:[#allocation8 + $0x310] sm:$0xff]
    %v464 = vld [vmem:[#allocation8 + $0x318] sm:$0xff]
    %v465 = vld [vmem:[#allocation8 + $0x320] sm:$0xff]
    %v466 = vld [vmem:[#allocation8 + $0x328] sm:$0xff]
    %v467 = vld [vmem:[#allocation8 + $0x330] sm:$0xff]
    %v468 = vld [vmem:[#allocation8 + $0x338] sm:$0xff]
    %v469 = vld [vmem:[#allocation8 + $0x340] sm:$0xff]
    %v470 = vld [vmem:[#allocation8 + $0x348] sm:$0xff]
    %v471 = vld [vmem:[#allocation8 + $0x350] sm:$0xff]
    %v472 = vld [vmem:[#allocation8 + $0x358] sm:$0xff]
    %v473 = vld [vmem:[#allocation8 + $0x360] sm:$0xff]
    %v474 = vld [vmem:[#allocation8 + $0x368] sm:$0xff]
    %v475 = vld [vmem:[#allocation8 + $0x370] sm:$0xff]
    %v476 = vld [vmem:[#allocation8 + $0x378] sm:$0xff]
    %v477 = vld [vmem:[#allocation8 + $0x380] sm:$0xff]
    %v478 = vld [vmem:[#allocation8 + $0x388] sm:$0xff]
    %v479 = vld [vmem:[#allocation8 + $0x390] sm:$0xff]
    %v480 = vld [vmem:[#allocation8 + $0x398] sm:$0xff]
    %v481 = vld [vmem:[#allocation8 + $0x3a0] sm:$0xff]
    %v482 = vld [vmem:[#allocation8 + $0x3a8] sm:$0xff]
    %v483 = vld [vmem:[#allocation8 + $0x3b0] sm:$0xff]
    %v484 = vld [vmem:[#allocation8 + $0x3b8] sm:$0xff]
    %v485 = vld [vmem:[#allocation8 + $0x3c0] sm:$0xff]
    %v486 = vld [vmem:[#allocation8 + $0x3c8] sm:$0xff]
    %v487 = vld [vmem:[#allocation8 + $0x3d0] sm:$0xff]
    %v488 = vld [vmem:[#allocation8 + $0x3d8] sm:$0xff]
    %v489 = vld [vmem:[#allocation8 + $0x3e0] sm:$0xff]
    %v490 = vld [vmem:[#allocation8 + $0x3e8] sm:$0xff]
    %v491 = vld [vmem:[#allocation8 + $0x3f0] sm:$0xff]
    %v492 = vld [vmem:[#allocation8 + $0x3f8] sm:$0xff]
    %v557 = vunpack.c.l.b16 %v429
    %v558 = vunpack.c.h.b16 %v429
    %v559 = vunpack.c.l.b16 %v430
    %v560 = vunpack.c.h.b16 %v430
    %v561 = vunpack.c.l.b16 %v431
    %v562 = vunpack.c.h.b16 %v431
    %v563 = vunpack.c.l.b16 %v432
    %v564 = vunpack.c.h.b16 %v432
    %v565 = vunpack.c.l.b16 %v433
    %v566 = vunpack.c.h.b16 %v433
    %v567 = vunpack.c.l.b16 %v434
    %v568 = vunpack.c.h.b16 %v434
    %v569 = vunpack.c.l.b16 %v435
    %v570 = vunpack.c.h.b16 %v435
    %v571 = vunpack.c.l.b16 %v436
    %v572 = vunpack.c.h.b16 %v436
    %v573 = vunpack.c.l.b16 %v437
    %v574 = vunpack.c.h.b16 %v437
    %v575 = vunpack.c.l.b16 %v438
    %v576 = vunpack.c.h.b16 %v438
    %v577 = vunpack.c.l.b16 %v439
    %v578 = vunpack.c.h.b16 %v439
    %v579 = vunpack.c.l.b16 %v440
    %v580 = vunpack.c.h.b16 %v440
    %v581 = vunpack.c.l.b16 %v441
    %v582 = vunpack.c.h.b16 %v441
    %v583 = vunpack.c.l.b16 %v442
    %v584 = vunpack.c.h.b16 %v442
    %v585 = vunpack.c.l.b16 %v443
    %v586 = vunpack.c.h.b16 %v443
    %v587 = vunpack.c.l.b16 %v444
    %v588 = vunpack.c.h.b16 %v444
    %v589 = vunpack.c.l.b16 %v445
    %v590 = vunpack.c.h.b16 %v445
    %v591 = vunpack.c.l.b16 %v446
    %v592 = vunpack.c.h.b16 %v446
    %v593 = vunpack.c.l.b16 %v447
    %v594 = vunpack.c.h.b16 %v447
    %v595 = vunpack.c.l.b16 %v448
    %v596 = vunpack.c.h.b16 %v448
    %v597 = vunpack.c.l.b16 %v449
    %v598 = vunpack.c.h.b16 %v449
    %v599 = vunpack.c.l.b16 %v450
    %v600 = vunpack.c.h.b16 %v450
    %v601 = vunpack.c.l.b16 %v451
    %v602 = vunpack.c.h.b16 %v451
    %v603 = vunpack.c.l.b16 %v452
    %v604 = vunpack.c.h.b16 %v452
    %v605 = vunpack.c.l.b16 %v453
    %v606 = vunpack.c.h.b16 %v453
    %v607 = vunpack.c.l.b16 %v454
    %v608 = vunpack.c.h.b16 %v454
    %v609 = vunpack.c.l.b16 %v455
    %v610 = vunpack.c.h.b16 %v455
    %v611 = vunpack.c.l.b16 %v456
    %v612 = vunpack.c.h.b16 %v456
    %v613 = vunpack.c.l.b16 %v457
    %v614 = vunpack.c.h.b16 %v457
    %v615 = vunpack.c.l.b16 %v458
    %v616 = vunpack.c.h.b16 %v458
    %v617 = vunpack.c.l.b16 %v459
    %v618 = vunpack.c.h.b16 %v459
    %v619 = vunpack.c.l.b16 %v460
    %v620 = vunpack.c.h.b16 %v460
    %v621 = vunpack.c.l.b16 %v461
    %v622 = vunpack.c.h.b16 %v461
    %v623 = vunpack.c.l.b16 %v462
    %v624 = vunpack.c.h.b16 %v462
    %v625 = vunpack.c.l.b16 %v463
    %v626 = vunpack.c.h.b16 %v463
    %v627 = vunpack.c.l.b16 %v464
    %v628 = vunpack.c.h.b16 %v464
    %v629 = vunpack.c.l.b16 %v465
    %v630 = vunpack.c.h.b16 %v465
    %v631 = vunpack.c.l.b16 %v466
    %v632 = vunpack.c.h.b16 %v466
    %v633 = vunpack.c.l.b16 %v467
    %v634 = vunpack.c.h.b16 %v467
    %v635 = vunpack.c.l.b16 %v468
    %v636 = vunpack.c.h.b16 %v468
    %v637 = vunpack.c.l.b16 %v469
    %v638 = vunpack.c.h.b16 %v469
    %v639 = vunpack.c.l.b16 %v470
    %v640 = vunpack.c.h.b16 %v470
    %v641 = vunpack.c.l.b16 %v471
    %v642 = vunpack.c.h.b16 %v471
    %v643 = vunpack.c.l.b16 %v472
    %v644 = vunpack.c.h.b16 %v472
    %v645 = vunpack.c.l.b16 %v473
    %v646 = vunpack.c.h.b16 %v473
    %v647 = vunpack.c.l.b16 %v474
    %v648 = vunpack.c.h.b16 %v474
    %v649 = vunpack.c.l.b16 %v475
    %v650 = vunpack.c.h.b16 %v475
    %v651 = vunpack.c.l.b16 %v476
    %v652 = vunpack.c.h.b16 %v476
    %v653 = vunpack.c.l.b16 %v477
    %v654 = vunpack.c.h.b16 %v477
    %v655 = vunpack.c.l.b16 %v478
    %v656 = vunpack.c.h.b16 %v478
    %v657 = vunpack.c.l.b16 %v479
    %v658 = vunpack.c.h.b16 %v479
    %v659 = vunpack.c.l.b16 %v480
    %v660 = vunpack.c.h.b16 %v480
    %v661 = vunpack.c.l.b16 %v481
    %v662 = vunpack.c.h.b16 %v481
    %v663 = vunpack.c.l.b16 %v482
    %v664 = vunpack.c.h.b16 %v482
    %v665 = vunpack.c.l.b16 %v483
    %v666 = vunpack.c.h.b16 %v483
    %v667 = vunpack.c.l.b16 %v484
    %v668 = vunpack.c.h.b16 %v484
    %v669 = vunpack.c.l.b16 %v485
    %v670 = vunpack.c.h.b16 %v485
    %v671 = vunpack.c.l.b16 %v486
    %v672 = vunpack.c.h.b16 %v486
    %v673 = vunpack.c.l.b16 %v487
    %v674 = vunpack.c.h.b16 %v487
    %v675 = vunpack.c.l.b16 %v488
    %v676 = vunpack.c.h.b16 %v488
    %v677 = vunpack.c.l.b16 %v489
    %v678 = vunpack.c.h.b16 %v489
    %v679 = vunpack.c.l.b16 %v490
    %v680 = vunpack.c.h.b16 %v490
    %v681 = vunpack.c.l.b16 %v491
    %v682 = vunpack.c.h.b16 %v491
    %v683 = vunpack.c.l.b16 %v492
    %v684 = vunpack.c.h.b16 %v492
    %v685 = vpack.c.b16 %v561, %v557
    %v686 = vpack.c.b16 %v562, %v558
    %v687 = vpack.c.b16 %v563, %v559
    %v688 = vpack.c.b16 %v564, %v560
    %v689 = vpack.c.b16 %v569, %v565
    %v690 = vpack.c.b16 %v570, %v566
    %v691 = vpack.c.b16 %v571, %v567
    %v692 = vpack.c.b16 %v572, %v568
    %v693 = vpack.c.b16 %v577, %v573
    %v694 = vpack.c.b16 %v578, %v574
    %v695 = vpack.c.b16 %v579, %v575
    %v696 = vpack.c.b16 %v580, %v576
    %v697 = vpack.c.b16 %v585, %v581
    %v698 = vpack.c.b16 %v586, %v582
    %v699 = vpack.c.b16 %v587, %v583
    %v700 = vpack.c.b16 %v588, %v584
    %v701 = vpack.c.b16 %v593, %v589
    %v702 = vpack.c.b16 %v594, %v590
    %v703 = vpack.c.b16 %v595, %v591
    %v704 = vpack.c.b16 %v596, %v592
    %v705 = vpack.c.b16 %v601, %v597
    %v706 = vpack.c.b16 %v602, %v598
    %v707 = vpack.c.b16 %v603, %v599
    %v708 = vpack.c.b16 %v604, %v600
    %v709 = vpack.c.b16 %v609, %v605
    %v710 = vpack.c.b16 %v610, %v606
    %v711 = vpack.c.b16 %v611, %v607
    %v712 = vpack.c.b16 %v612, %v608
    %v713 = vpack.c.b16 %v617, %v613
    %v714 = vpack.c.b16 %v618, %v614
    %v715 = vpack.c.b16 %v619, %v615
    %v716 = vpack.c.b16 %v620, %v616
    %v717 = vpack.c.b16 %v625, %v621
    %v718 = vpack.c.b16 %v626, %v622
    %v719 = vpack.c.b16 %v627, %v623
    %v720 = vpack.c.b16 %v628, %v624
    %v721 = vpack.c.b16 %v633, %v629
    %v722 = vpack.c.b16 %v634, %v630
    %v723 = vpack.c.b16 %v635, %v631
    %v724 = vpack.c.b16 %v636, %v632
    %v725 = vpack.c.b16 %v641, %v637
    %v726 = vpack.c.b16 %v642, %v638
    %v727 = vpack.c.b16 %v643, %v639
    %v728 = vpack.c.b16 %v644, %v640
    %v729 = vpack.c.b16 %v649, %v645
    %v730 = vpack.c.b16 %v650, %v646
    %v731 = vpack.c.b16 %v651, %v647
    %v732 = vpack.c.b16 %v652, %v648
    %v733 = vpack.c.b16 %v657, %v653
    %v734 = vpack.c.b16 %v658, %v654
    %v735 = vpack.c.b16 %v659, %v655
    %v736 = vpack.c.b16 %v660, %v656
    %v737 = vpack.c.b16 %v665, %v661
    %v738 = vpack.c.b16 %v666, %v662
    %v739 = vpack.c.b16 %v667, %v663
    %v740 = vpack.c.b16 %v668, %v664
    %v741 = vpack.c.b16 %v673, %v669
    %v742 = vpack.c.b16 %v674, %v670
    %v743 = vpack.c.b16 %v675, %v671
    %v744 = vpack.c.b16 %v676, %v672
    %v745 = vpack.c.b16 %v681, %v677
    %v746 = vpack.c.b16 %v682, %v678
    %v747 = vpack.c.b16 %v683, %v679
    %v748 = vpack.c.b16 %v684, %v680
    %813 = vmatpush.bf16.msra.mxu0 %v713
    %814 = vmatpush.bf16.msra.mxu0 %v709
    %815 = vmatpush.bf16.msra.mxu0 %v705
    %816 = vmatpush.bf16.msra.mxu0 %v701
    %817 = vmatpush.bf16.msra.mxu0 %v697
    %818 = vmatpush.bf16.msra.mxu0 %v693
    %819 = vmatpush.bf16.msra.mxu0 %v689
    %820 = vmatpush.bf16.msra.mxu0 %v685
    %821 = vmatmul.bf16.gmra.mxu0 %v427
    %v822 = vpop.f32.mrf.mxu0
    %v823 = vadd.f32 0.0, %v822
    %v824 = vpop.f32.mrf.mxu0
    %825 = vdwg.mxu0
    %826 = vmatpush.bf16.msra.mxu0 %v745
    %827 = vmatpush.bf16.msra.mxu0 %v741
    %828 = vmatpush.bf16.msra.mxu0 %v737
    %829 = vmatpush.bf16.msra.mxu0 %v733
    %830 = vmatpush.bf16.msra.mxu0 %v729
    %831 = vmatpush.bf16.msra.mxu0 %v725
    %832 = vmatpush.bf16.msra.mxu0 %v721
    %833 = vmatpush.bf16.msra.mxu0 %v717
    %834 = vmatmul.bf16.gmra.mxu0 %v428
    %v835 = vpop.f32.mrf.mxu0
    %v836 = vadd.f32 %v823, %v835
    %v837 = vpop.f32.mrf.mxu0
    %838 = vdwg.mxu0
    %839 = vmatpush.bf16.msra.mxu0 %v714
    %840 = vmatpush.bf16.msra.mxu0 %v710
    %841 = vmatpush.bf16.msra.mxu0 %v706
    %842 = vmatpush.bf16.msra.mxu0 %v702
    %843 = vmatpush.bf16.msra.mxu0 %v698
    %844 = vmatpush.bf16.msra.mxu0 %v694
    %845 = vmatpush.bf16.msra.mxu0 %v690
    %846 = vmatpush.bf16.msra.mxu0 %v686
    %847 = vmatmul.bf16.gmra.mxu0 %v427
    %v848 = vpop.f32.mrf.mxu0
    %v849 = vadd.f32 0.0, %v848
    %v850 = vpop.f32.mrf.mxu0
    %851 = vdwg.mxu0
    %852 = vmatpush.bf16.msra.mxu0 %v746
    %853 = vmatpush.bf16.msra.mxu0 %v742
    %854 = vmatpush.bf16.msra.mxu0 %v738
    %855 = vmatpush.bf16.msra.mxu0 %v734
    %856 = vmatpush.bf16.msra.mxu0 %v730
    %857 = vmatpush.bf16.msra.mxu0 %v726
    %858 = vmatpush.bf16.msra.mxu0 %v722
    %859 = vmatpush.bf16.msra.mxu0 %v718
    %860 = vmatmul.bf16.gmra.mxu0 %v428
    %v861 = vpop.f32.mrf.mxu0
    %v862 = vadd.f32 %v849, %v861
    %v863 = vpop.f32.mrf.mxu0
    %864 = vdwg.mxu0
    %865 = vmatpush.bf16.msra.mxu0 %v715
    %866 = vmatpush.bf16.msra.mxu0 %v711
    %867 = vmatpush.bf16.msra.mxu0 %v707
    %868 = vmatpush.bf16.msra.mxu0 %v703
    %869 = vmatpush.bf16.msra.mxu0 %v699
    %870 = vmatpush.bf16.msra.mxu0 %v695
    %871 = vmatpush.bf16.msra.mxu0 %v691
    %872 = vmatpush.bf16.msra.mxu0 %v687
    %873 = vmatmul.bf16.gmra.mxu0 %v427
    %v874 = vpop.f32.mrf.mxu0
    %v875 = vadd.f32 0.0, %v874
    %v876 = vpop.f32.mrf.mxu0
    %877 = vdwg.mxu0
    %878 = vmatpush.bf16.msra.mxu0 %v747
    %879 = vmatpush.bf16.msra.mxu0 %v743
    %880 = vmatpush.bf16.msra.mxu0 %v739
    %881 = vmatpush.bf16.msra.mxu0 %v735
    %882 = vmatpush.bf16.msra.mxu0 %v731
    %883 = vmatpush.bf16.msra.mxu0 %v727
    %884 = vmatpush.bf16.msra.mxu0 %v723
    %885 = vmatpush.bf16.msra.mxu0 %v719
    %886 = vmatmul.bf16.gmra.mxu0 %v428
    %v887 = vpop.f32.mrf.mxu0
    %v888 = vadd.f32 %v875, %v887
    %v889 = vpop.f32.mrf.mxu0
    %890 = vdwg.mxu0
    %891 = vmatpush.bf16.msra.mxu0 %v716
    %892 = vmatpush.bf16.msra.mxu0 %v712
    %893 = vmatpush.bf16.msra.mxu0 %v708
    %894 = vmatpush.bf16.msra.mxu0 %v704
    %895 = vmatpush.bf16.msra.mxu0 %v700
    %896 = vmatpush.bf16.msra.mxu0 %v696
    %897 = vmatpush.bf16.msra.mxu0 %v692
    %898 = vmatpush.bf16.msra.mxu0 %v688
    %899 = vmatmul.bf16.gmra.mxu0 %v427
    %v900 = vpop.f32.mrf.mxu0
    %v901 = vadd.f32 0.0, %v900
    %v902 = vpop.f32.mrf.mxu0
    %903 = vdwg.mxu0
    %904 = vmatpush.bf16.msra.mxu0 %v748
    %905 = vmatpush.bf16.msra.mxu0 %v744
    %906 = vmatpush.bf16.msra.mxu0 %v740
    %907 = vmatpush.bf16.msra.mxu0 %v736
    %908 = vmatpush.bf16.msra.mxu0 %v732
    %909 = vmatpush.bf16.msra.mxu0 %v728
    %910 = vmatpush.bf16.msra.mxu0 %v724
    %911 = vmatpush.bf16.msra.mxu0 %v720
    %912 = vmatmul.bf16.gmra.mxu0 %v428
    %v913 = vpop.f32.mrf.mxu0
    %v914 = vadd.f32 %v901, %v913
    %v915 = vpop.f32.mrf.mxu0
    %916 = vdwg.mxu0
    %v981 = vunpack.c.l.b16 %v233
    %v982 = vunpack.c.h.b16 %v233
    %v983 = vunpack.c.l.b16 %v234
    %v984 = vunpack.c.h.b16 %v234
    %v985 = vunpack.c.l.b16 %v235
    %v986 = vunpack.c.h.b16 %v235
    %v987 = vunpack.c.l.b16 %v236
    %v988 = vunpack.c.h.b16 %v236
    %v989 = vunpack.c.l.b16 %v237
    %v990 = vunpack.c.h.b16 %v237
    %v991 = vunpack.c.l.b16 %v238
    %v992 = vunpack.c.h.b16 %v238
    %v993 = vunpack.c.l.b16 %v239
    %v994 = vunpack.c.h.b16 %v239
    %v995 = vunpack.c.l.b16 %v240
    %v996 = vunpack.c.h.b16 %v240
    %v997 = vunpack.c.l.b16 %v241
    %v998 = vunpack.c.h.b16 %v241
    %v999 = vunpack.c.l.b16 %v242
    %v1000 = vunpack.c.h.b16 %v242
    %v1001 = vunpack.c.l.b16 %v243
    %v1002 = vunpack.c.h.b16 %v243
    %v1003 = vunpack.c.l.b16 %v244
    %v1004 = vunpack.c.h.b16 %v244
    %v1005 = vunpack.c.l.b16 %v245
    %v1006 = vunpack.c.h.b16 %v245
    %v1007 = vunpack.c.l.b16 %v246
    %v1008 = vunpack.c.h.b16 %v246
    %v1009 = vunpack.c.l.b16 %v247
    %v1010 = vunpack.c.h.b16 %v247
    %v1011 = vunpack.c.l.b16 %v248
    %v1012 = vunpack.c.h.b16 %v248
    %v1013 = vunpack.c.l.b16 %v249
    %v1014 = vunpack.c.h.b16 %v249
    %v1015 = vunpack.c.l.b16 %v250
    %v1016 = vunpack.c.h.b16 %v250
    %v1017 = vunpack.c.l.b16 %v251
    %v1018 = vunpack.c.h.b16 %v251
    %v1019 = vunpack.c.l.b16 %v252
    %v1020 = vunpack.c.h.b16 %v252
    %v1021 = vunpack.c.l.b16 %v253
    %v1022 = vunpack.c.h.b16 %v253
    %v1023 = vunpack.c.l.b16 %v254
    %v1024 = vunpack.c.h.b16 %v254
    %v1025 = vunpack.c.l.b16 %v255
    %v1026 = vunpack.c.h.b16 %v255
    %v1027 = vunpack.c.l.b16 %v256
    %v1028 = vunpack.c.h.b16 %v256
    %v1029 = vunpack.c.l.b16 %v257
    %v1030 = vunpack.c.h.b16 %v257
    %v1031 = vunpack.c.l.b16 %v258
    %v1032 = vunpack.c.h.b16 %v258
    %v1033 = vunpack.c.l.b16 %v259
    %v1034 = vunpack.c.h.b16 %v259
    %v1035 = vunpack.c.l.b16 %v260
    %v1036 = vunpack.c.h.b16 %v260
    %v1037 = vunpack.c.l.b16 %v261
    %v1038 = vunpack.c.h.b16 %v261
    %v1039 = vunpack.c.l.b16 %v262
    %v1040 = vunpack.c.h.b16 %v262
    %v1041 = vunpack.c.l.b16 %v263
    %v1042 = vunpack.c.h.b16 %v263
    %v1043 = vunpack.c.l.b16 %v264
    %v1044 = vunpack.c.h.b16 %v264
    %v1045 = vunpack.c.l.b16 %v265
    %v1046 = vunpack.c.h.b16 %v265
    %v1047 = vunpack.c.l.b16 %v266
    %v1048 = vunpack.c.h.b16 %v266
    %v1049 = vunpack.c.l.b16 %v267
    %v1050 = vunpack.c.h.b16 %v267
    %v1051 = vunpack.c.l.b16 %v268
    %v1052 = vunpack.c.h.b16 %v268
    %v1053 = vunpack.c.l.b16 %v269
    %v1054 = vunpack.c.h.b16 %v269
    %v1055 = vunpack.c.l.b16 %v270
    %v1056 = vunpack.c.h.b16 %v270
    %v1057 = vunpack.c.l.b16 %v271
    %v1058 = vunpack.c.h.b16 %v271
    %v1059 = vunpack.c.l.b16 %v272
    %v1060 = vunpack.c.h.b16 %v272
    %v1061 = vunpack.c.l.b16 %v273
    %v1062 = vunpack.c.h.b16 %v273
    %v1063 = vunpack.c.l.b16 %v274
    %v1064 = vunpack.c.h.b16 %v274
    %v1065 = vunpack.c.l.b16 %v275
    %v1066 = vunpack.c.h.b16 %v275
    %v1067 = vunpack.c.l.b16 %v276
    %v1068 = vunpack.c.h.b16 %v276
    %v1069 = vunpack.c.l.b16 %v277
    %v1070 = vunpack.c.h.b16 %v277
    %v1071 = vunpack.c.l.b16 %v278
    %v1072 = vunpack.c.h.b16 %v278
    %v1073 = vunpack.c.l.b16 %v279
    %v1074 = vunpack.c.h.b16 %v279
    %v1075 = vunpack.c.l.b16 %v280
    %v1076 = vunpack.c.h.b16 %v280
    %v1077 = vunpack.c.l.b16 %v281
    %v1078 = vunpack.c.h.b16 %v281
    %v1079 = vunpack.c.l.b16 %v282
    %v1080 = vunpack.c.h.b16 %v282
    %v1081 = vunpack.c.l.b16 %v283
    %v1082 = vunpack.c.h.b16 %v283
    %v1083 = vunpack.c.l.b16 %v284
    %v1084 = vunpack.c.h.b16 %v284
    %v1085 = vunpack.c.l.b16 %v285
    %v1086 = vunpack.c.h.b16 %v285
    %v1087 = vunpack.c.l.b16 %v286
    %v1088 = vunpack.c.h.b16 %v286
    %v1089 = vunpack.c.l.b16 %v287
    %v1090 = vunpack.c.h.b16 %v287
    %v1091 = vunpack.c.l.b16 %v288
    %v1092 = vunpack.c.h.b16 %v288
    %v1093 = vunpack.c.l.b16 %v289
    %v1094 = vunpack.c.h.b16 %v289
    %v1095 = vunpack.c.l.b16 %v290
    %v1096 = vunpack.c.h.b16 %v290
    %v1097 = vunpack.c.l.b16 %v291
    %v1098 = vunpack.c.h.b16 %v291
    %v1099 = vunpack.c.l.b16 %v292
    %v1100 = vunpack.c.h.b16 %v292
    %v1101 = vunpack.c.l.b16 %v293
    %v1102 = vunpack.c.h.b16 %v293
    %v1103 = vunpack.c.l.b16 %v294
    %v1104 = vunpack.c.h.b16 %v294
    %v1105 = vunpack.c.l.b16 %v295
    %v1106 = vunpack.c.h.b16 %v295
    %v1107 = vunpack.c.l.b16 %v296
    %v1108 = vunpack.c.h.b16 %v296
    %v1109 = vpack.c.b16 %v985, %v981
    %v1110 = vpack.c.b16 %v986, %v982
    %v1111 = vpack.c.b16 %v987, %v983
    %v1112 = vpack.c.b16 %v988, %v984
    %v1113 = vpack.c.b16 %v993, %v989
    %v1114 = vpack.c.b16 %v994, %v990
    %v1115 = vpack.c.b16 %v995, %v991
    %v1116 = vpack.c.b16 %v996, %v992
    %v1117 = vpack.c.b16 %v1001, %v997
    %v1118 = vpack.c.b16 %v1002, %v998
    %v1119 = vpack.c.b16 %v1003, %v999
    %v1120 = vpack.c.b16 %v1004, %v1000
    %v1121 = vpack.c.b16 %v1009, %v1005
    %v1122 = vpack.c.b16 %v1010, %v1006
    %v1123 = vpack.c.b16 %v1011, %v1007
    %v1124 = vpack.c.b16 %v1012, %v1008
    %v1125 = vpack.c.b16 %v1017, %v1013
    %v1126 = vpack.c.b16 %v1018, %v1014
    %v1127 = vpack.c.b16 %v1019, %v1015
    %v1128 = vpack.c.b16 %v1020, %v1016
    %v1129 = vpack.c.b16 %v1025, %v1021
    %v1130 = vpack.c.b16 %v1026, %v1022
    %v1131 = vpack.c.b16 %v1027, %v1023
    %v1132 = vpack.c.b16 %v1028, %v1024
    %v1133 = vpack.c.b16 %v1033, %v1029
    %v1134 = vpack.c.b16 %v1034, %v1030
    %v1135 = vpack.c.b16 %v1035, %v1031
    %v1136 = vpack.c.b16 %v1036, %v1032
    %v1137 = vpack.c.b16 %v1041, %v1037
    %v1138 = vpack.c.b16 %v1042, %v1038
    %v1139 = vpack.c.b16 %v1043, %v1039
    %v1140 = vpack.c.b16 %v1044, %v1040
    %v1141 = vpack.c.b16 %v1049, %v1045
    %v1142 = vpack.c.b16 %v1050, %v1046
    %v1143 = vpack.c.b16 %v1051, %v1047
    %v1144 = vpack.c.b16 %v1052, %v1048
    %v1145 = vpack.c.b16 %v1057, %v1053
    %v1146 = vpack.c.b16 %v1058, %v1054
    %v1147 = vpack.c.b16 %v1059, %v1055
    %v1148 = vpack.c.b16 %v1060, %v1056
    %v1149 = vpack.c.b16 %v1065, %v1061
    %v1150 = vpack.c.b16 %v1066, %v1062
    %v1151 = vpack.c.b16 %v1067, %v1063
    %v1152 = vpack.c.b16 %v1068, %v1064
    %v1153 = vpack.c.b16 %v1073, %v1069
    %v1154 = vpack.c.b16 %v1074, %v1070
    %v1155 = vpack.c.b16 %v1075, %v1071
    %v1156 = vpack.c.b16 %v1076, %v1072
    %v1157 = vpack.c.b16 %v1081, %v1077
    %v1158 = vpack.c.b16 %v1082, %v1078
    %v1159 = vpack.c.b16 %v1083, %v1079
    %v1160 = vpack.c.b16 %v1084, %v1080
    %v1161 = vpack.c.b16 %v1089, %v1085
    %v1162 = vpack.c.b16 %v1090, %v1086
    %v1163 = vpack.c.b16 %v1091, %v1087
    %v1164 = vpack.c.b16 %v1092, %v1088
    %v1165 = vpack.c.b16 %v1097, %v1093
    %v1166 = vpack.c.b16 %v1098, %v1094
    %v1167 = vpack.c.b16 %v1099, %v1095
    %v1168 = vpack.c.b16 %v1100, %v1096
    %v1169 = vpack.c.b16 %v1105, %v1101
    %v1170 = vpack.c.b16 %v1106, %v1102
    %v1171 = vpack.c.b16 %v1107, %v1103
    %v1172 = vpack.c.b16 %v1108, %v1104
    %1237 = vmatpush.bf16.msra.mxu0 %v1137
    %1238 = vmatpush.bf16.msra.mxu0 %v1133
    %1239 = vmatpush.bf16.msra.mxu0 %v1129
    %1240 = vmatpush.bf16.msra.mxu0 %v1125
    %1241 = vmatpush.bf16.msra.mxu0 %v1121
    %1242 = vmatpush.bf16.msra.mxu0 %v1117
    %1243 = vmatpush.bf16.msra.mxu0 %v1113
    %1244 = vmatpush.bf16.msra.mxu0 %v1109
    %1245 = vmatmul.bf16.gmra.mxu0 %v231
    %v1246 = vpop.f32.mrf.mxu0
    %v1247 = vadd.f32 %v836, %v1246
    %v1248 = vpop.f32.mrf.mxu0
    %1249 = vdwg.mxu0
    %1250 = vmatpush.bf16.msra.mxu0 %v1169
    %1251 = vmatpush.bf16.msra.mxu0 %v1165
    %1252 = vmatpush.bf16.msra.mxu0 %v1161
    %1253 = vmatpush.bf16.msra.mxu0 %v1157
    %1254 = vmatpush.bf16.msra.mxu0 %v1153
    %1255 = vmatpush.bf16.msra.mxu0 %v1149
    %1256 = vmatpush.bf16.msra.mxu0 %v1145
    %1257 = vmatpush.bf16.msra.mxu0 %v1141
    %1258 = vmatmul.bf16.gmra.mxu0 %v232
    %v1259 = vpop.f32.mrf.mxu0
    %v1260 = vadd.f32 %v1247, %v1259
    %v1261 = vpop.f32.mrf.mxu0
    %1262 = vdwg.mxu0
    %1263 = vmatpush.bf16.msra.mxu0 %v1138
    %1264 = vmatpush.bf16.msra.mxu0 %v1134
    %1265 = vmatpush.bf16.msra.mxu0 %v1130
    %1266 = vmatpush.bf16.msra.mxu0 %v1126
    %1267 = vmatpush.bf16.msra.mxu0 %v1122
    %1268 = vmatpush.bf16.msra.mxu0 %v1118
    %1269 = vmatpush.bf16.msra.mxu0 %v1114
    %1270 = vmatpush.bf16.msra.mxu0 %v1110
    %1271 = vmatmul.bf16.gmra.mxu0 %v231
    %v1272 = vpop.f32.mrf.mxu0
    %v1273 = vadd.f32 %v862, %v1272
    %v1274 = vpop.f32.mrf.mxu0
    %1275 = vdwg.mxu0
    %1276 = vmatpush.bf16.msra.mxu0 %v1170
    %1277 = vmatpush.bf16.msra.mxu0 %v1166
    %1278 = vmatpush.bf16.msra.mxu0 %v1162
    %1279 = vmatpush.bf16.msra.mxu0 %v1158
    %1280 = vmatpush.bf16.msra.mxu0 %v1154
    %1281 = vmatpush.bf16.msra.mxu0 %v1150
    %1282 = vmatpush.bf16.msra.mxu0 %v1146
    %1283 = vmatpush.bf16.msra.mxu0 %v1142
    %1284 = vmatmul.bf16.gmra.mxu0 %v232
    %v1285 = vpop.f32.mrf.mxu0
    %v1286 = vadd.f32 %v1273, %v1285
    %v1287 = vpop.f32.mrf.mxu0
    %1288 = vdwg.mxu0
    %1289 = vmatpush.bf16.msra.mxu0 %v1139
    %1290 = vmatpush.bf16.msra.mxu0 %v1135
    %1291 = vmatpush.bf16.msra.mxu0 %v1131
    %1292 = vmatpush.bf16.msra.mxu0 %v1127
    %1293 = vmatpush.bf16.msra.mxu0 %v1123
    %1294 = vmatpush.bf16.msra.mxu0 %v1119
    %1295 = vmatpush.bf16.msra.mxu0 %v1115
    %1296 = vmatpush.bf16.msra.mxu0 %v1111
    %1297 = vmatmul.bf16.gmra.mxu0 %v231
    %v1298 = vpop.f32.mrf.mxu0
    %v1299 = vadd.f32 %v888, %v1298
    %v1300 = vpop.f32.mrf.mxu0
    %1301 = vdwg.mxu0
    %1302 = vmatpush.bf16.msra.mxu0 %v1171
    %1303 = vmatpush.bf16.msra.mxu0 %v1167
    %1304 = vmatpush.bf16.msra.mxu0 %v1163
    %1305 = vmatpush.bf16.msra.mxu0 %v1159
    %1306 = vmatpush.bf16.msra.mxu0 %v1155
    %1307 = vmatpush.bf16.msra.mxu0 %v1151
    %1308 = vmatpush.bf16.msra.mxu0 %v1147
    %1309 = vmatpush.bf16.msra.mxu0 %v1143
    %1310 = vmatmul.bf16.gmra.mxu0 %v232
    %v1311 = vpop.f32.mrf.mxu0
    %v1312 = vadd.f32 %v1299, %v1311
    %v1313 = vpop.f32.mrf.mxu0
    %1314 = vdwg.mxu0
    %1315 = vmatpush.bf16.msra.mxu0 %v1140
    %1316 = vmatpush.bf16.msra.mxu0 %v1136
    %1317 = vmatpush.bf16.msra.mxu0 %v1132
    %1318 = vmatpush.bf16.msra.mxu0 %v1128
    %1319 = vmatpush.bf16.msra.mxu0 %v1124
    %1320 = vmatpush.bf16.msra.mxu0 %v1120
    %1321 = vmatpush.bf16.msra.mxu0 %v1116
    %1322 = vmatpush.bf16.msra.mxu0 %v1112
    %1323 = vmatmul.bf16.gmra.mxu0 %v231
    %v1324 = vpop.f32.mrf.mxu0
    %v1325 = vadd.f32 %v914, %v1324
    %v1326 = vpop.f32.mrf.mxu0
    %1327 = vdwg.mxu0
    %1328 = vmatpush.bf16.msra.mxu0 %v1172
    %1329 = vmatpush.bf16.msra.mxu0 %v1168
    %1330 = vmatpush.bf16.msra.mxu0 %v1164
    %1331 = vmatpush.bf16.msra.mxu0 %v1160
    %1332 = vmatpush.bf16.msra.mxu0 %v1156
    %1333 = vmatpush.bf16.msra.mxu0 %v1152
    %1334 = vmatpush.bf16.msra.mxu0 %v1148
    %1335 = vmatpush.bf16.msra.mxu0 %v1144
    %1336 = vmatmul.bf16.gmra.mxu0 %v232
    %v1337 = vpop.f32.mrf.mxu0
    %v1338 = vadd.f32 %v1325, %v1337
    %v1339 = vpop.f32.mrf.mxu0
    %1340 = vdwg.mxu0
    %v1341 = vld [vmem:[#allocation5 + $0x10] sm:$0xff]
    %v1342 = vld [vmem:[#allocation5 + $0x30] sm:$0xff]
    %v1343 = vld [vmem:[#allocation5 + $0x50] sm:$0xff]
    %v1344 = vld [vmem:[#allocation5 + $0x70] sm:$0xff]
    %v1345 = vld [vmem:[#allocation5 + $0x90] sm:$0xff]
    %v1346 = vld [vmem:[#allocation5 + $0xb0] sm:$0xff]
    %v1347 = vld [vmem:[#allocation5 + $0xd0] sm:$0xff]
    %v1348 = vld [vmem:[#allocation5 + $0xf0] sm:$0xff]
    %v1349 = vld [vmem:[#allocation5 + $0x110] sm:$0xff]
    %v1350 = vld [vmem:[#allocation5 + $0x130] sm:$0xff]
    %v1351 = vld [vmem:[#allocation5 + $0x150] sm:$0xff]
    %v1352 = vld [vmem:[#allocation5 + $0x170] sm:$0xff]
    %v1353 = vld [vmem:[#allocation5 + $0x190] sm:$0xff]
    %v1354 = vld [vmem:[#allocation5 + $0x1b0] sm:$0xff]
    %v1355 = vld [vmem:[#allocation5 + $0x1d0] sm:$0xff]
    %v1356 = vld [vmem:[#allocation5 + $0x1f0] sm:$0xff]
    %v1357 = vld [vmem:[#allocation7 + $0x4] sm:$0x3]
    %v1359 = vperm.slane %v1357, 0
    %v1360 = vperm.slane %v1357, 1
    %v1379 = vunpack.c.l.b16 %v1341
    %v1380 = vunpack.c.h.b16 %v1341
    %v1381 = vunpack.c.l.b16 %v1342
    %v1382 = vunpack.c.h.b16 %v1342
    %v1383 = vunpack.c.l.b16 %v1343
    %v1384 = vunpack.c.h.b16 %v1343
    %v1385 = vunpack.c.l.b16 %v1344
    %v1386 = vunpack.c.h.b16 %v1344
    %v1387 = vunpack.c.l.b16 %v1345
    %v1388 = vunpack.c.h.b16 %v1345
    %v1389 = vunpack.c.l.b16 %v1346
    %v1390 = vunpack.c.h.b16 %v1346
    %v1391 = vunpack.c.l.b16 %v1347
    %v1392 = vunpack.c.h.b16 %v1347
    %v1393 = vunpack.c.l.b16 %v1348
    %v1394 = vunpack.c.h.b16 %v1348
    %v1395 = vunpack.c.l.b16 %v1349
    %v1396 = vunpack.c.h.b16 %v1349
    %v1397 = vunpack.c.l.b16 %v1350
    %v1398 = vunpack.c.h.b16 %v1350
    %v1399 = vunpack.c.l.b16 %v1351
    %v1400 = vunpack.c.h.b16 %v1351
    %v1401 = vunpack.c.l.b16 %v1352
    %v1402 = vunpack.c.h.b16 %v1352
    %v1403 = vunpack.c.l.b16 %v1353
    %v1404 = vunpack.c.h.b16 %v1353
    %v1405 = vunpack.c.l.b16 %v1354
    %v1406 = vunpack.c.h.b16 %v1354
    %v1407 = vunpack.c.l.b16 %v1355
    %v1408 = vunpack.c.h.b16 %v1355
    %v1409 = vunpack.c.l.b16 %v1356
    %v1410 = vunpack.c.h.b16 %v1356
    %v1411 = vpack.c.b16 %v1381, %v1379
    %v1412 = vpack.c.b16 %v1382, %v1380
    %v1413 = vpack.c.b16 %v1385, %v1383
    %v1414 = vpack.c.b16 %v1386, %v1384
    %v1415 = vpack.c.b16 %v1389, %v1387
    %v1416 = vpack.c.b16 %v1390, %v1388
    %v1417 = vpack.c.b16 %v1393, %v1391
    %v1418 = vpack.c.b16 %v1394, %v1392
    %v1419 = vpack.c.b16 %v1397, %v1395
    %v1420 = vpack.c.b16 %v1398, %v1396
    %v1421 = vpack.c.b16 %v1401, %v1399
    %v1422 = vpack.c.b16 %v1402, %v1400
    %v1423 = vpack.c.b16 %v1405, %v1403
    %v1424 = vpack.c.b16 %v1406, %v1404
    %v1425 = vpack.c.b16 %v1409, %v1407
    %v1426 = vpack.c.b16 %v1410, %v1408
    %1443 = vmatpush.bf16.msra.mxu0 %v1425
    %1444 = vmatpush.bf16.msra.mxu0 %v1423
    %1445 = vmatpush.bf16.msra.mxu0 %v1421
    %1446 = vmatpush.bf16.msra.mxu0 %v1419
    %1447 = vmatpush.bf16.msra.mxu0 %v1417
    %1448 = vmatpush.bf16.msra.mxu0 %v1415
    %1449 = vmatpush.bf16.msra.mxu0 %v1413
    %1450 = vmatpush.bf16.msra.mxu0 %v1411
    %1451 = vmatmul.bf16.gmra.mxu0 %v100
    %v1452 = vpop.f32.mrf.mxu0
    %v1453 = vadd.f32 %v1359, %v1452
    %v1454 = vpop.f32.mrf.mxu0
    %1455 = vdwg.mxu0
    %1456 = vmatpush.bf16.msra.mxu0 %v1426
    %1457 = vmatpush.bf16.msra.mxu0 %v1424
    %1458 = vmatpush.bf16.msra.mxu0 %v1422
    %1459 = vmatpush.bf16.msra.mxu0 %v1420
    %1460 = vmatpush.bf16.msra.mxu0 %v1418
    %1461 = vmatpush.bf16.msra.mxu0 %v1416
    %1462 = vmatpush.bf16.msra.mxu0 %v1414
    %1463 = vmatpush.bf16.msra.mxu0 %v1412
    %1464 = vmatmul.bf16.gmra.mxu0 %v100
    %v1465 = vpop.f32.mrf.mxu0
    %v1466 = vadd.f32 %v1360, %v1465
    %v1467 = vpop.f32.mrf.mxu0
    %1468 = vdwg.mxu0
    %v1469 = vmax.f32 %v1453, 0.0
    %v1470 = vmax.f32 %v1466, 0.0
    %v1471 = vpack.c.bf16 %v1469, %v1469
    %v1472 = vpack.c.bf16 %v1470, %v1470
    %v1473 = vld [vmem:[#allocation8 + $0x400] sm:$0xff]
    %v1474 = vld [vmem:[#allocation8 + $0x408] sm:$0xff]
    %v1475 = vld [vmem:[#allocation8 + $0x410] sm:$0xff]
    %v1476 = vld [vmem:[#allocation8 + $0x418] sm:$0xff]
    %v1477 = vld [vmem:[#allocation8 + $0x420] sm:$0xff]
    %v1478 = vld [vmem:[#allocation8 + $0x428] sm:$0xff]
    %v1479 = vld [vmem:[#allocation8 + $0x430] sm:$0xff]
    %v1480 = vld [vmem:[#allocation8 + $0x438] sm:$0xff]
    %v1481 = vld [vmem:[#allocation8 + $0x440] sm:$0xff]
    %v1482 = vld [vmem:[#allocation8 + $0x448] sm:$0xff]
    %v1483 = vld [vmem:[#allocation8 + $0x450] sm:$0xff]
    %v1484 = vld [vmem:[#allocation8 + $0x458] sm:$0xff]
    %v1485 = vld [vmem:[#allocation8 + $0x460] sm:$0xff]
    %v1486 = vld [vmem:[#allocation8 + $0x468] sm:$0xff]
    %v1487 = vld [vmem:[#allocation8 + $0x470] sm:$0xff]
    %v1488 = vld [vmem:[#allocation8 + $0x478] sm:$0xff]
    %v1489 = vld [vmem:[#allocation8 + $0x480] sm:$0xff]
    %v1490 = vld [vmem:[#allocation8 + $0x488] sm:$0xff]
    %v1491 = vld [vmem:[#allocation8 + $0x490] sm:$0xff]
    %v1492 = vld [vmem:[#allocation8 + $0x498] sm:$0xff]
    %v1493 = vld [vmem:[#allocation8 + $0x4a0] sm:$0xff]
    %v1494 = vld [vmem:[#allocation8 + $0x4a8] sm:$0xff]
    %v1495 = vld [vmem:[#allocation8 + $0x4b0] sm:$0xff]
    %v1496 = vld [vmem:[#allocation8 + $0x4b8] sm:$0xff]
    %v1497 = vld [vmem:[#allocation8 + $0x4c0] sm:$0xff]
    %v1498 = vld [vmem:[#allocation8 + $0x4c8] sm:$0xff]
    %v1499 = vld [vmem:[#allocation8 + $0x4d0] sm:$0xff]
    %v1500 = vld [vmem:[#allocation8 + $0x4d8] sm:$0xff]
    %v1501 = vld [vmem:[#allocation8 + $0x4e0] sm:$0xff]
    %v1502 = vld [vmem:[#allocation8 + $0x4e8] sm:$0xff]
    %v1503 = vld [vmem:[#allocation8 + $0x4f0] sm:$0xff]
    %v1504 = vld [vmem:[#allocation8 + $0x4f8] sm:$0xff]
    %v1505 = vld [vmem:[#allocation8 + $0x500] sm:$0xff]
    %v1506 = vld [vmem:[#allocation8 + $0x508] sm:$0xff]
    %v1507 = vld [vmem:[#allocation8 + $0x510] sm:$0xff]
    %v1508 = vld [vmem:[#allocation8 + $0x518] sm:$0xff]
    %v1509 = vld [vmem:[#allocation8 + $0x520] sm:$0xff]
    %v1510 = vld [vmem:[#allocation8 + $0x528] sm:$0xff]
    %v1511 = vld [vmem:[#allocation8 + $0x530] sm:$0xff]
    %v1512 = vld [vmem:[#allocation8 + $0x538] sm:$0xff]
    %v1513 = vld [vmem:[#allocation8 + $0x540] sm:$0xff]
    %v1514 = vld [vmem:[#allocation8 + $0x548] sm:$0xff]
    %v1515 = vld [vmem:[#allocation8 + $0x550] sm:$0xff]
    %v1516 = vld [vmem:[#allocation8 + $0x558] sm:$0xff]
    %v1517 = vld [vmem:[#allocation8 + $0x560] sm:$0xff]
    %v1518 = vld [vmem:[#allocation8 + $0x568] sm:$0xff]
    %v1519 = vld [vmem:[#allocation8 + $0x570] sm:$0xff]
    %v1520 = vld [vmem:[#allocation8 + $0x578] sm:$0xff]
    %v1521 = vld [vmem:[#allocation8 + $0x580] sm:$0xff]
    %v1522 = vld [vmem:[#allocation8 + $0x588] sm:$0xff]
    %v1523 = vld [vmem:[#allocation8 + $0x590] sm:$0xff]
    %v1524 = vld [vmem:[#allocation8 + $0x598] sm:$0xff]
    %v1525 = vld [vmem:[#allocation8 + $0x5a0] sm:$0xff]
    %v1526 = vld [vmem:[#allocation8 + $0x5a8] sm:$0xff]
    %v1527 = vld [vmem:[#allocation8 + $0x5b0] sm:$0xff]
    %v1528 = vld [vmem:[#allocation8 + $0x5b8] sm:$0xff]
    %v1529 = vld [vmem:[#allocation8 + $0x5c0] sm:$0xff]
    %v1530 = vld [vmem:[#allocation8 + $0x5c8] sm:$0xff]
    %v1531 = vld [vmem:[#allocation8 + $0x5d0] sm:$0xff]
    %v1532 = vld [vmem:[#allocation8 + $0x5d8] sm:$0xff]
    %v1533 = vld [vmem:[#allocation8 + $0x5e0] sm:$0xff]
    %v1534 = vld [vmem:[#allocation8 + $0x5e8] sm:$0xff]
    %v1535 = vld [vmem:[#allocation8 + $0x5f0] sm:$0xff]
    %v1536 = vld [vmem:[#allocation8 + $0x5f8] sm:$0xff]
    %v1601 = vunpack.c.l.b16 %v1473
    %v1602 = vunpack.c.h.b16 %v1473
    %v1603 = vunpack.c.l.b16 %v1474
    %v1604 = vunpack.c.h.b16 %v1474
    %v1605 = vunpack.c.l.b16 %v1475
    %v1606 = vunpack.c.h.b16 %v1475
    %v1607 = vunpack.c.l.b16 %v1476
    %v1608 = vunpack.c.h.b16 %v1476
    %v1609 = vunpack.c.l.b16 %v1477
    %v1610 = vunpack.c.h.b16 %v1477
    %v1611 = vunpack.c.l.b16 %v1478
    %v1612 = vunpack.c.h.b16 %v1478
    %v1613 = vunpack.c.l.b16 %v1479
    %v1614 = vunpack.c.h.b16 %v1479
    %v1615 = vunpack.c.l.b16 %v1480
    %v1616 = vunpack.c.h.b16 %v1480
    %v1617 = vunpack.c.l.b16 %v1481
    %v1618 = vunpack.c.h.b16 %v1481
    %v1619 = vunpack.c.l.b16 %v1482
    %v1620 = vunpack.c.h.b16 %v1482
    %v1621 = vunpack.c.l.b16 %v1483
    %v1622 = vunpack.c.h.b16 %v1483
    %v1623 = vunpack.c.l.b16 %v1484
    %v1624 = vunpack.c.h.b16 %v1484
    %v1625 = vunpack.c.l.b16 %v1485
    %v1626 = vunpack.c.h.b16 %v1485
    %v1627 = vunpack.c.l.b16 %v1486
    %v1628 = vunpack.c.h.b16 %v1486
    %v1629 = vunpack.c.l.b16 %v1487
    %v1630 = vunpack.c.h.b16 %v1487
    %v1631 = vunpack.c.l.b16 %v1488
    %v1632 = vunpack.c.h.b16 %v1488
    %v1633 = vunpack.c.l.b16 %v1489
    %v1634 = vunpack.c.h.b16 %v1489
    %v1635 = vunpack.c.l.b16 %v1490
    %v1636 = vunpack.c.h.b16 %v1490
    %v1637 = vunpack.c.l.b16 %v1491
    %v1638 = vunpack.c.h.b16 %v1491
    %v1639 = vunpack.c.l.b16 %v1492
    %v1640 = vunpack.c.h.b16 %v1492
    %v1641 = vunpack.c.l.b16 %v1493
    %v1642 = vunpack.c.h.b16 %v1493
    %v1643 = vunpack.c.l.b16 %v1494
    %v1644 = vunpack.c.h.b16 %v1494
    %v1645 = vunpack.c.l.b16 %v1495
    %v1646 = vunpack.c.h.b16 %v1495
    %v1647 = vunpack.c.l.b16 %v1496
    %v1648 = vunpack.c.h.b16 %v1496
    %v1649 = vunpack.c.l.b16 %v1497
    %v1650 = vunpack.c.h.b16 %v1497
    %v1651 = vunpack.c.l.b16 %v1498
    %v1652 = vunpack.c.h.b16 %v1498
    %v1653 = vunpack.c.l.b16 %v1499
    %v1654 = vunpack.c.h.b16 %v1499
    %v1655 = vunpack.c.l.b16 %v1500
    %v1656 = vunpack.c.h.b16 %v1500
    %v1657 = vunpack.c.l.b16 %v1501
    %v1658 = vunpack.c.h.b16 %v1501
    %v1659 = vunpack.c.l.b16 %v1502
    %v1660 = vunpack.c.h.b16 %v1502
    %v1661 = vunpack.c.l.b16 %v1503
    %v1662 = vunpack.c.h.b16 %v1503
    %v1663 = vunpack.c.l.b16 %v1504
    %v1664 = vunpack.c.h.b16 %v1504
    %v1665 = vunpack.c.l.b16 %v1505
    %v1666 = vunpack.c.h.b16 %v1505
    %v1667 = vunpack.c.l.b16 %v1506
    %v1668 = vunpack.c.h.b16 %v1506
    %v1669 = vunpack.c.l.b16 %v1507
    %v1670 = vunpack.c.h.b16 %v1507
    %v1671 = vunpack.c.l.b16 %v1508
    %v1672 = vunpack.c.h.b16 %v1508
    %v1673 = vunpack.c.l.b16 %v1509
    %v1674 = vunpack.c.h.b16 %v1509
    %v1675 = vunpack.c.l.b16 %v1510
    %v1676 = vunpack.c.h.b16 %v1510
    %v1677 = vunpack.c.l.b16 %v1511
    %v1678 = vunpack.c.h.b16 %v1511
    %v1679 = vunpack.c.l.b16 %v1512
    %v1680 = vunpack.c.h.b16 %v1512
    %v1681 = vunpack.c.l.b16 %v1513
    %v1682 = vunpack.c.h.b16 %v1513
    %v1683 = vunpack.c.l.b16 %v1514
    %v1684 = vunpack.c.h.b16 %v1514
    %v1685 = vunpack.c.l.b16 %v1515
    %v1686 = vunpack.c.h.b16 %v1515
    %v1687 = vunpack.c.l.b16 %v1516
    %v1688 = vunpack.c.h.b16 %v1516
    %v1689 = vunpack.c.l.b16 %v1517
    %v1690 = vunpack.c.h.b16 %v1517
    %v1691 = vunpack.c.l.b16 %v1518
    %v1692 = vunpack.c.h.b16 %v1518
    %v1693 = vunpack.c.l.b16 %v1519
    %v1694 = vunpack.c.h.b16 %v1519
    %v1695 = vunpack.c.l.b16 %v1520
    %v1696 = vunpack.c.h.b16 %v1520
    %v1697 = vunpack.c.l.b16 %v1521
    %v1698 = vunpack.c.h.b16 %v1521
    %v1699 = vunpack.c.l.b16 %v1522
    %v1700 = vunpack.c.h.b16 %v1522
    %v1701 = vunpack.c.l.b16 %v1523
    %v1702 = vunpack.c.h.b16 %v1523
    %v1703 = vunpack.c.l.b16 %v1524
    %v1704 = vunpack.c.h.b16 %v1524
    %v1705 = vunpack.c.l.b16 %v1525
    %v1706 = vunpack.c.h.b16 %v1525
    %v1707 = vunpack.c.l.b16 %v1526
    %v1708 = vunpack.c.h.b16 %v1526
    %v1709 = vunpack.c.l.b16 %v1527
    %v1710 = vunpack.c.h.b16 %v1527
    %v1711 = vunpack.c.l.b16 %v1528
    %v1712 = vunpack.c.h.b16 %v1528
    %v1713 = vunpack.c.l.b16 %v1529
    %v1714 = vunpack.c.h.b16 %v1529
    %v1715 = vunpack.c.l.b16 %v1530
    %v1716 = vunpack.c.h.b16 %v1530
    %v1717 = vunpack.c.l.b16 %v1531
    %v1718 = vunpack.c.h.b16 %v1531
    %v1719 = vunpack.c.l.b16 %v1532
    %v1720 = vunpack.c.h.b16 %v1532
    %v1721 = vunpack.c.l.b16 %v1533
    %v1722 = vunpack.c.h.b16 %v1533
    %v1723 = vunpack.c.l.b16 %v1534
    %v1724 = vunpack.c.h.b16 %v1534
    %v1725 = vunpack.c.l.b16 %v1535
    %v1726 = vunpack.c.h.b16 %v1535
    %v1727 = vunpack.c.l.b16 %v1536
    %v1728 = vunpack.c.h.b16 %v1536
    %v1729 = vpack.c.b16 %v1605, %v1601
    %v1730 = vpack.c.b16 %v1606, %v1602
    %v1731 = vpack.c.b16 %v1607, %v1603
    %v1732 = vpack.c.b16 %v1608, %v1604
    %v1733 = vpack.c.b16 %v1613, %v1609
    %v1734 = vpack.c.b16 %v1614, %v1610
    %v1735 = vpack.c.b16 %v1615, %v1611
    %v1736 = vpack.c.b16 %v1616, %v1612
    %v1737 = vpack.c.b16 %v1621, %v1617
    %v1738 = vpack.c.b16 %v1622, %v1618
    %v1739 = vpack.c.b16 %v1623, %v1619
    %v1740 = vpack.c.b16 %v1624, %v1620
    %v1741 = vpack.c.b16 %v1629, %v1625
    %v1742 = vpack.c.b16 %v1630, %v1626
    %v1743 = vpack.c.b16 %v1631, %v1627
    %v1744 = vpack.c.b16 %v1632, %v1628
    %v1745 = vpack.c.b16 %v1637, %v1633
    %v1746 = vpack.c.b16 %v1638, %v1634
    %v1747 = vpack.c.b16 %v1639, %v1635
    %v1748 = vpack.c.b16 %v1640, %v1636
    %v1749 = vpack.c.b16 %v1645, %v1641
    %v1750 = vpack.c.b16 %v1646, %v1642
    %v1751 = vpack.c.b16 %v1647, %v1643
    %v1752 = vpack.c.b16 %v1648, %v1644
    %v1753 = vpack.c.b16 %v1653, %v1649
    %v1754 = vpack.c.b16 %v1654, %v1650
    %v1755 = vpack.c.b16 %v1655, %v1651
    %v1756 = vpack.c.b16 %v1656, %v1652
    %v1757 = vpack.c.b16 %v1661, %v1657
    %v1758 = vpack.c.b16 %v1662, %v1658
    %v1759 = vpack.c.b16 %v1663, %v1659
    %v1760 = vpack.c.b16 %v1664, %v1660
    %v1761 = vpack.c.b16 %v1669, %v1665
    %v1762 = vpack.c.b16 %v1670, %v1666
    %v1763 = vpack.c.b16 %v1671, %v1667
    %v1764 = vpack.c.b16 %v1672, %v1668
    %v1765 = vpack.c.b16 %v1677, %v1673
    %v1766 = vpack.c.b16 %v1678, %v1674
    %v1767 = vpack.c.b16 %v1679, %v1675
    %v1768 = vpack.c.b16 %v1680, %v1676
    %v1769 = vpack.c.b16 %v1685, %v1681
    %v1770 = vpack.c.b16 %v1686, %v1682
    %v1771 = vpack.c.b16 %v1687, %v1683
    %v1772 = vpack.c.b16 %v1688, %v1684
    %v1773 = vpack.c.b16 %v1693, %v1689
    %v1774 = vpack.c.b16 %v1694, %v1690
    %v1775 = vpack.c.b16 %v1695, %v1691
    %v1776 = vpack.c.b16 %v1696, %v1692
    %v1777 = vpack.c.b16 %v1701, %v1697
    %v1778 = vpack.c.b16 %v1702, %v1698
    %v1779 = vpack.c.b16 %v1703, %v1699
    %v1780 = vpack.c.b16 %v1704, %v1700
    %v1781 = vpack.c.b16 %v1709, %v1705
    %v1782 = vpack.c.b16 %v1710, %v1706
    %v1783 = vpack.c.b16 %v1711, %v1707
    %v1784 = vpack.c.b16 %v1712, %v1708
    %v1785 = vpack.c.b16 %v1717, %v1713
    %v1786 = vpack.c.b16 %v1718, %v1714
    %v1787 = vpack.c.b16 %v1719, %v1715
    %v1788 = vpack.c.b16 %v1720, %v1716
    %v1789 = vpack.c.b16 %v1725, %v1721
    %v1790 = vpack.c.b16 %v1726, %v1722
    %v1791 = vpack.c.b16 %v1727, %v1723
    %v1792 = vpack.c.b16 %v1728, %v1724
    %1857 = vmatpush.bf16.msra.mxu0 %v1757
    %1858 = vmatpush.bf16.msra.mxu0 %v1753
    %1859 = vmatpush.bf16.msra.mxu0 %v1749
    %1860 = vmatpush.bf16.msra.mxu0 %v1745
    %1861 = vmatpush.bf16.msra.mxu0 %v1741
    %1862 = vmatpush.bf16.msra.mxu0 %v1737
    %1863 = vmatpush.bf16.msra.mxu0 %v1733
    %1864 = vmatpush.bf16.msra.mxu0 %v1729
    %1865 = vmatmul.bf16.gmra.mxu0 %v1471
    %v1866 = vpop.f32.mrf.mxu0
    %v1867 = vadd.f32 0.0, %v1866
    %v1868 = vpop.f32.mrf.mxu0
    %1869 = vdwg.mxu0
    %1870 = vmatpush.bf16.msra.mxu0 %v1789
    %1871 = vmatpush.bf16.msra.mxu0 %v1785
    %1872 = vmatpush.bf16.msra.mxu0 %v1781
    %1873 = vmatpush.bf16.msra.mxu0 %v1777
    %1874 = vmatpush.bf16.msra.mxu0 %v1773
    %1875 = vmatpush.bf16.msra.mxu0 %v1769
    %1876 = vmatpush.bf16.msra.mxu0 %v1765
    %1877 = vmatpush.bf16.msra.mxu0 %v1761
    %1878 = vmatmul.bf16.gmra.mxu0 %v1472
    %v1879 = vpop.f32.mrf.mxu0
    %v1880 = vadd.f32 %v1867, %v1879
    %v1881 = vpop.f32.mrf.mxu0
    %1882 = vdwg.mxu0
    %1883 = vmatpush.bf16.msra.mxu0 %v1758
    %1884 = vmatpush.bf16.msra.mxu0 %v1754
    %1885 = vmatpush.bf16.msra.mxu0 %v1750
    %1886 = vmatpush.bf16.msra.mxu0 %v1746
    %1887 = vmatpush.bf16.msra.mxu0 %v1742
    %1888 = vmatpush.bf16.msra.mxu0 %v1738
    %1889 = vmatpush.bf16.msra.mxu0 %v1734
    %1890 = vmatpush.bf16.msra.mxu0 %v1730
    %1891 = vmatmul.bf16.gmra.mxu0 %v1471
    %v1892 = vpop.f32.mrf.mxu0
    %v1893 = vadd.f32 0.0, %v1892
    %v1894 = vpop.f32.mrf.mxu0
    %1895 = vdwg.mxu0
    %1896 = vmatpush.bf16.msra.mxu0 %v1790
    %1897 = vmatpush.bf16.msra.mxu0 %v1786
    %1898 = vmatpush.bf16.msra.mxu0 %v1782
    %1899 = vmatpush.bf16.msra.mxu0 %v1778
    %1900 = vmatpush.bf16.msra.mxu0 %v1774
    %1901 = vmatpush.bf16.msra.mxu0 %v1770
    %1902 = vmatpush.bf16.msra.mxu0 %v1766
    %1903 = vmatpush.bf16.msra.mxu0 %v1762
    %1904 = vmatmul.bf16.gmra.mxu0 %v1472
    %v1905 = vpop.f32.mrf.mxu0
    %v1906 = vadd.f32 %v1893, %v1905
    %v1907 = vpop.f32.mrf.mxu0
    %1908 = vdwg.mxu0
    %1909 = vmatpush.bf16.msra.mxu0 %v1759
    %1910 = vmatpush.bf16.msra.mxu0 %v1755
    %1911 = vmatpush.bf16.msra.mxu0 %v1751
    %1912 = vmatpush.bf16.msra.mxu0 %v1747
    %1913 = vmatpush.bf16.msra.mxu0 %v1743
    %1914 = vmatpush.bf16.msra.mxu0 %v1739
    %1915 = vmatpush.bf16.msra.mxu0 %v1735
    %1916 = vmatpush.bf16.msra.mxu0 %v1731
    %1917 = vmatmul.bf16.gmra.mxu0 %v1471
    %v1918 = vpop.f32.mrf.mxu0
    %v1919 = vadd.f32 0.0, %v1918
    %v1920 = vpop.f32.mrf.mxu0
    %1921 = vdwg.mxu0
    %1922 = vmatpush.bf16.msra.mxu0 %v1791
    %1923 = vmatpush.bf16.msra.mxu0 %v1787
    %1924 = vmatpush.bf16.msra.mxu0 %v1783
    %1925 = vmatpush.bf16.msra.mxu0 %v1779
    %1926 = vmatpush.bf16.msra.mxu0 %v1775
    %1927 = vmatpush.bf16.msra.mxu0 %v1771
    %1928 = vmatpush.bf16.msra.mxu0 %v1767
    %1929 = vmatpush.bf16.msra.mxu0 %v1763
    %1930 = vmatmul.bf16.gmra.mxu0 %v1472
    %v1931 = vpop.f32.mrf.mxu0
    %v1932 = vadd.f32 %v1919, %v1931
    %v1933 = vpop.f32.mrf.mxu0
    %1934 = vdwg.mxu0
    %1935 = vmatpush.bf16.msra.mxu0 %v1760
    %1936 = vmatpush.bf16.msra.mxu0 %v1756
    %1937 = vmatpush.bf16.msra.mxu0 %v1752
    %1938 = vmatpush.bf16.msra.mxu0 %v1748
    %1939 = vmatpush.bf16.msra.mxu0 %v1744
    %1940 = vmatpush.bf16.msra.mxu0 %v1740
    %1941 = vmatpush.bf16.msra.mxu0 %v1736
    %1942 = vmatpush.bf16.msra.mxu0 %v1732
    %1943 = vmatmul.bf16.gmra.mxu0 %v1471
    %v1944 = vpop.f32.mrf.mxu0
    %v1945 = vadd.f32 0.0, %v1944
    %v1946 = vpop.f32.mrf.mxu0
    %1947 = vdwg.mxu0
    %1948 = vmatpush.bf16.msra.mxu0 %v1792
    %1949 = vmatpush.bf16.msra.mxu0 %v1788
    %1950 = vmatpush.bf16.msra.mxu0 %v1784
    %1951 = vmatpush.bf16.msra.mxu0 %v1780
    %1952 = vmatpush.bf16.msra.mxu0 %v1776
    %1953 = vmatpush.bf16.msra.mxu0 %v1772
    %1954 = vmatpush.bf16.msra.mxu0 %v1768
    %1955 = vmatpush.bf16.msra.mxu0 %v1764
    %1956 = vmatmul.bf16.gmra.mxu0 %v1472
    %v1957 = vpop.f32.mrf.mxu0
    %v1958 = vadd.f32 %v1945, %v1957
    %v1959 = vpop.f32.mrf.mxu0
    %1960 = vdwg.mxu0
    %v1961 = vadd.f32 %v1260, %v1880
    %v1962 = vadd.f32 %v1286, %v1906
    %v1963 = vadd.f32 %v1312, %v1932
    %v1964 = vadd.f32 %v1338, %v1958
    %v1965 = vld [vmem:[#allocation5 + $0x18] sm:$0xff]
    %v1966 = vld [vmem:[#allocation5 + $0x38] sm:$0xff]
    %v1967 = vld [vmem:[#allocation5 + $0x58] sm:$0xff]
    %v1968 = vld [vmem:[#allocation5 + $0x78] sm:$0xff]
    %v1969 = vld [vmem:[#allocation5 + $0x98] sm:$0xff]
    %v1970 = vld [vmem:[#allocation5 + $0xb8] sm:$0xff]
    %v1971 = vld [vmem:[#allocation5 + $0xd8] sm:$0xff]
    %v1972 = vld [vmem:[#allocation5 + $0xf8] sm:$0xff]
    %v1973 = vld [vmem:[#allocation5 + $0x118] sm:$0xff]
    %v1974 = vld [vmem:[#allocation5 + $0x138] sm:$0xff]
    %v1975 = vld [vmem:[#allocation5 + $0x158] sm:$0xff]
    %v1976 = vld [vmem:[#allocation5 + $0x178] sm:$0xff]
    %v1977 = vld [vmem:[#allocation5 + $0x198] sm:$0xff]
    %v1978 = vld [vmem:[#allocation5 + $0x1b8] sm:$0xff]
    %v1979 = vld [vmem:[#allocation5 + $0x1d8] sm:$0xff]
    %v1980 = vld [vmem:[#allocation5 + $0x1f8] sm:$0xff]
    %v1981 = vld [vmem:[#allocation7 + $0x6] sm:$0x3]
    %v1983 = vperm.slane %v1981, 0
    %v1984 = vperm.slane %v1981, 1
    %v2003 = vunpack.c.l.b16 %v1965
    %v2004 = vunpack.c.h.b16 %v1965
    %v2005 = vunpack.c.l.b16 %v1966
    %v2006 = vunpack.c.h.b16 %v1966
    %v2007 = vunpack.c.l.b16 %v1967
    %v2008 = vunpack.c.h.b16 %v1967
    %v2009 = vunpack.c.l.b16 %v1968
    %v2010 = vunpack.c.h.b16 %v1968
    %v2011 = vunpack.c.l.b16 %v1969
    %v2012 = vunpack.c.h.b16 %v1969
    %v2013 = vunpack.c.l.b16 %v1970
    %v2014 = vunpack.c.h.b16 %v1970
    %v2015 = vunpack.c.l.b16 %v1971
    %v2016 = vunpack.c.h.b16 %v1971
    %v2017 = vunpack.c.l.b16 %v1972
    %v2018 = vunpack.c.h.b16 %v1972
    %v2019 = vunpack.c.l.b16 %v1973
    %v2020 = vunpack.c.h.b16 %v1973
    %v2021 = vunpack.c.l.b16 %v1974
    %v2022 = vunpack.c.h.b16 %v1974
    %v2023 = vunpack.c.l.b16 %v1975
    %v2024 = vunpack.c.h.b16 %v1975
    %v2025 = vunpack.c.l.b16 %v1976
    %v2026 = vunpack.c.h.b16 %v1976
    %v2027 = vunpack.c.l.b16 %v1977
    %v2028 = vunpack.c.h.b16 %v1977
    %v2029 = vunpack.c.l.b16 %v1978
    %v2030 = vunpack.c.h.b16 %v1978
    %v2031 = vunpack.c.l.b16 %v1979
    %v2032 = vunpack.c.h.b16 %v1979
    %v2033 = vunpack.c.l.b16 %v1980
    %v2034 = vunpack.c.h.b16 %v1980
    %v2035 = vpack.c.b16 %v2005, %v2003
    %v2036 = vpack.c.b16 %v2006, %v2004
    %v2037 = vpack.c.b16 %v2009, %v2007
    %v2038 = vpack.c.b16 %v2010, %v2008
    %v2039 = vpack.c.b16 %v2013, %v2011
    %v2040 = vpack.c.b16 %v2014, %v2012
    %v2041 = vpack.c.b16 %v2017, %v2015
    %v2042 = vpack.c.b16 %v2018, %v2016
    %v2043 = vpack.c.b16 %v2021, %v2019
    %v2044 = vpack.c.b16 %v2022, %v2020
    %v2045 = vpack.c.b16 %v2025, %v2023
    %v2046 = vpack.c.b16 %v2026, %v2024
    %v2047 = vpack.c.b16 %v2029, %v2027
    %v2048 = vpack.c.b16 %v2030, %v2028
    %v2049 = vpack.c.b16 %v2033, %v2031
    %v2050 = vpack.c.b16 %v2034, %v2032
    %2067 = vmatpush.bf16.msra.mxu0 %v2049
    %2068 = vmatpush.bf16.msra.mxu0 %v2047
    %2069 = vmatpush.bf16.msra.mxu0 %v2045
    %2070 = vmatpush.bf16.msra.mxu0 %v2043
    %2071 = vmatpush.bf16.msra.mxu0 %v2041
    %2072 = vmatpush.bf16.msra.mxu0 %v2039
    %2073 = vmatpush.bf16.msra.mxu0 %v2037
    %2074 = vmatpush.bf16.msra.mxu0 %v2035
    %2075 = vmatmul.bf16.gmra.mxu0 %v100
    %v2076 = vpop.f32.mrf.mxu0
    %v2077 = vadd.f32 %v1983, %v2076
    %v2078 = vpop.f32.mrf.mxu0
    %2079 = vdwg.mxu0
    %2080 = vmatpush.bf16.msra.mxu0 %v2050
    %2081 = vmatpush.bf16.msra.mxu0 %v2048
    %2082 = vmatpush.bf16.msra.mxu0 %v2046
    %2083 = vmatpush.bf16.msra.mxu0 %v2044
    %2084 = vmatpush.bf16.msra.mxu0 %v2042
    %2085 = vmatpush.bf16.msra.mxu0 %v2040
    %2086 = vmatpush.bf16.msra.mxu0 %v2038
    %2087 = vmatpush.bf16.msra.mxu0 %v2036
    %2088 = vmatmul.bf16.gmra.mxu0 %v100
    %v2089 = vpop.f32.mrf.mxu0
    %v2090 = vadd.f32 %v1984, %v2089
    %v2091 = vpop.f32.mrf.mxu0
    %2092 = vdwg.mxu0
    %v2093 = vmax.f32 %v2077, 0.0
    %v2094 = vmax.f32 %v2090, 0.0
    %v2095 = vpack.c.bf16 %v2093, %v2093
    %v2096 = vpack.c.bf16 %v2094, %v2094
    %v2097 = vld [vmem:[#allocation8 + $0x600] sm:$0xff]
    %v2098 = vld [vmem:[#allocation8 + $0x608] sm:$0xff]
    %v2099 = vld [vmem:[#allocation8 + $0x610] sm:$0xff]
    %v2100 = vld [vmem:[#allocation8 + $0x618] sm:$0xff]
    %v2101 = vld [vmem:[#allocation8 + $0x620] sm:$0xff]
    %v2102 = vld [vmem:[#allocation8 + $0x628] sm:$0xff]
    %v2103 = vld [vmem:[#allocation8 + $0x630] sm:$0xff]
    %v2104 = vld [vmem:[#allocation8 + $0x638] sm:$0xff]
    %v2105 = vld [vmem:[#allocation8 + $0x640] sm:$0xff]
    %v2106 = vld [vmem:[#allocation8 + $0x648] sm:$0xff]
    %v2107 = vld [vmem:[#allocation8 + $0x650] sm:$0xff]
    %v2108 = vld [vmem:[#allocation8 + $0x658] sm:$0xff]
    %v2109 = vld [vmem:[#allocation8 + $0x660] sm:$0xff]
    %v2110 = vld [vmem:[#allocation8 + $0x668] sm:$0xff]
    %v2111 = vld [vmem:[#allocation8 + $0x670] sm:$0xff]
    %v2112 = vld [vmem:[#allocation8 + $0x678] sm:$0xff]
    %v2113 = vld [vmem:[#allocation8 + $0x680] sm:$0xff]
    %v2114 = vld [vmem:[#allocation8 + $0x688] sm:$0xff]
    %v2115 = vld [vmem:[#allocation8 + $0x690] sm:$0xff]
    %v2116 = vld [vmem:[#allocation8 + $0x698] sm:$0xff]
    %v2117 = vld [vmem:[#allocation8 + $0x6a0] sm:$0xff]
    %v2118 = vld [vmem:[#allocation8 + $0x6a8] sm:$0xff]
    %v2119 = vld [vmem:[#allocation8 + $0x6b0] sm:$0xff]
    %v2120 = vld [vmem:[#allocation8 + $0x6b8] sm:$0xff]
    %v2121 = vld [vmem:[#allocation8 + $0x6c0] sm:$0xff]
    %v2122 = vld [vmem:[#allocation8 + $0x6c8] sm:$0xff]
    %v2123 = vld [vmem:[#allocation8 + $0x6d0] sm:$0xff]
    %v2124 = vld [vmem:[#allocation8 + $0x6d8] sm:$0xff]
    %v2125 = vld [vmem:[#allocation8 + $0x6e0] sm:$0xff]
    %v2126 = vld [vmem:[#allocation8 + $0x6e8] sm:$0xff]
    %v2127 = vld [vmem:[#allocation8 + $0x6f0] sm:$0xff]
    %v2128 = vld [vmem:[#allocation8 + $0x6f8] sm:$0xff]
    %v2129 = vld [vmem:[#allocation8 + $0x700] sm:$0xff]
    %v2130 = vld [vmem:[#allocation8 + $0x708] sm:$0xff]
    %v2131 = vld [vmem:[#allocation8 + $0x710] sm:$0xff]
    %v2132 = vld [vmem:[#allocation8 + $0x718] sm:$0xff]
    %v2133 = vld [vmem:[#allocation8 + $0x720] sm:$0xff]
    %v2134 = vld [vmem:[#allocation8 + $0x728] sm:$0xff]
    %v2135 = vld [vmem:[#allocation8 + $0x730] sm:$0xff]
    %v2136 = vld [vmem:[#allocation8 + $0x738] sm:$0xff]
    %v2137 = vld [vmem:[#allocation8 + $0x740] sm:$0xff]
    %v2138 = vld [vmem:[#allocation8 + $0x748] sm:$0xff]
    %v2139 = vld [vmem:[#allocation8 + $0x750] sm:$0xff]
    %v2140 = vld [vmem:[#allocation8 + $0x758] sm:$0xff]
    %v2141 = vld [vmem:[#allocation8 + $0x760] sm:$0xff]
    %v2142 = vld [vmem:[#allocation8 + $0x768] sm:$0xff]
    %v2143 = vld [vmem:[#allocation8 + $0x770] sm:$0xff]
    %v2144 = vld [vmem:[#allocation8 + $0x778] sm:$0xff]
    %v2145 = vld [vmem:[#allocation8 + $0x780] sm:$0xff]
    %v2146 = vld [vmem:[#allocation8 + $0x788] sm:$0xff]
    %v2147 = vld [vmem:[#allocation8 + $0x790] sm:$0xff]
    %v2148 = vld [vmem:[#allocation8 + $0x798] sm:$0xff]
    %v2149 = vld [vmem:[#allocation8 + $0x7a0] sm:$0xff]
    %v2150 = vld [vmem:[#allocation8 + $0x7a8] sm:$0xff]
    %v2151 = vld [vmem:[#allocation8 + $0x7b0] sm:$0xff]
    %v2152 = vld [vmem:[#allocation8 + $0x7b8] sm:$0xff]
    %v2153 = vld [vmem:[#allocation8 + $0x7c0] sm:$0xff]
    %v2154 = vld [vmem:[#allocation8 + $0x7c8] sm:$0xff]
    %v2155 = vld [vmem:[#allocation8 + $0x7d0] sm:$0xff]
    %v2156 = vld [vmem:[#allocation8 + $0x7d8] sm:$0xff]
    %v2157 = vld [vmem:[#allocation8 + $0x7e0] sm:$0xff]
    %v2158 = vld [vmem:[#allocation8 + $0x7e8] sm:$0xff]
    %v2159 = vld [vmem:[#allocation8 + $0x7f0] sm:$0xff]
    %v2160 = vld [vmem:[#allocation8 + $0x7f8] sm:$0xff]
    %v2225 = vunpack.c.l.b16 %v2097
    %v2226 = vunpack.c.h.b16 %v2097
    %v2227 = vunpack.c.l.b16 %v2098
    %v2228 = vunpack.c.h.b16 %v2098
    %v2229 = vunpack.c.l.b16 %v2099
    %v2230 = vunpack.c.h.b16 %v2099
    %v2231 = vunpack.c.l.b16 %v2100
    %v2232 = vunpack.c.h.b16 %v2100
    %v2233 = vunpack.c.l.b16 %v2101
    %v2234 = vunpack.c.h.b16 %v2101
    %v2235 = vunpack.c.l.b16 %v2102
    %v2236 = vunpack.c.h.b16 %v2102
    %v2237 = vunpack.c.l.b16 %v2103
    %v2238 = vunpack.c.h.b16 %v2103
    %v2239 = vunpack.c.l.b16 %v2104
    %v2240 = vunpack.c.h.b16 %v2104
    %v2241 = vunpack.c.l.b16 %v2105
    %v2242 = vunpack.c.h.b16 %v2105
    %v2243 = vunpack.c.l.b16 %v2106
    %v2244 = vunpack.c.h.b16 %v2106
    %v2245 = vunpack.c.l.b16 %v2107
    %v2246 = vunpack.c.h.b16 %v2107
    %v2247 = vunpack.c.l.b16 %v2108
    %v2248 = vunpack.c.h.b16 %v2108
    %v2249 = vunpack.c.l.b16 %v2109
    %v2250 = vunpack.c.h.b16 %v2109
    %v2251 = vunpack.c.l.b16 %v2110
    %v2252 = vunpack.c.h.b16 %v2110
    %v2253 = vunpack.c.l.b16 %v2111
    %v2254 = vunpack.c.h.b16 %v2111
    %v2255 = vunpack.c.l.b16 %v2112
    %v2256 = vunpack.c.h.b16 %v2112
    %v2257 = vunpack.c.l.b16 %v2113
    %v2258 = vunpack.c.h.b16 %v2113
    %v2259 = vunpack.c.l.b16 %v2114
    %v2260 = vunpack.c.h.b16 %v2114
    %v2261 = vunpack.c.l.b16 %v2115
    %v2262 = vunpack.c.h.b16 %v2115
    %v2263 = vunpack.c.l.b16 %v2116
    %v2264 = vunpack.c.h.b16 %v2116
    %v2265 = vunpack.c.l.b16 %v2117
    %v2266 = vunpack.c.h.b16 %v2117
    %v2267 = vunpack.c.l.b16 %v2118
    %v2268 = vunpack.c.h.b16 %v2118
    %v2269 = vunpack.c.l.b16 %v2119
    %v2270 = vunpack.c.h.b16 %v2119
    %v2271 = vunpack.c.l.b16 %v2120
    %v2272 = vunpack.c.h.b16 %v2120
    %v2273 = vunpack.c.l.b16 %v2121
    %v2274 = vunpack.c.h.b16 %v2121
    %v2275 = vunpack.c.l.b16 %v2122
    %v2276 = vunpack.c.h.b16 %v2122
    %v2277 = vunpack.c.l.b16 %v2123
    %v2278 = vunpack.c.h.b16 %v2123
    %v2279 = vunpack.c.l.b16 %v2124
    %v2280 = vunpack.c.h.b16 %v2124
    %v2281 = vunpack.c.l.b16 %v2125
    %v2282 = vunpack.c.h.b16 %v2125
    %v2283 = vunpack.c.l.b16 %v2126
    %v2284 = vunpack.c.h.b16 %v2126
    %v2285 = vunpack.c.l.b16 %v2127
    %v2286 = vunpack.c.h.b16 %v2127
    %v2287 = vunpack.c.l.b16 %v2128
    %v2288 = vunpack.c.h.b16 %v2128
    %v2289 = vunpack.c.l.b16 %v2129
    %v2290 = vunpack.c.h.b16 %v2129
    %v2291 = vunpack.c.l.b16 %v2130
    %v2292 = vunpack.c.h.b16 %v2130
    %v2293 = vunpack.c.l.b16 %v2131
    %v2294 = vunpack.c.h.b16 %v2131
    %v2295 = vunpack.c.l.b16 %v2132
    %v2296 = vunpack.c.h.b16 %v2132
    %v2297 = vunpack.c.l.b16 %v2133
    %v2298 = vunpack.c.h.b16 %v2133
    %v2299 = vunpack.c.l.b16 %v2134
    %v2300 = vunpack.c.h.b16 %v2134
    %v2301 = vunpack.c.l.b16 %v2135
    %v2302 = vunpack.c.h.b16 %v2135
    %v2303 = vunpack.c.l.b16 %v2136
    %v2304 = vunpack.c.h.b16 %v2136
    %v2305 = vunpack.c.l.b16 %v2137
    %v2306 = vunpack.c.h.b16 %v2137
    %v2307 = vunpack.c.l.b16 %v2138
    %v2308 = vunpack.c.h.b16 %v2138
    %v2309 = vunpack.c.l.b16 %v2139
    %v2310 = vunpack.c.h.b16 %v2139
    %v2311 = vunpack.c.l.b16 %v2140
    %v2312 = vunpack.c.h.b16 %v2140
    %v2313 = vunpack.c.l.b16 %v2141
    %v2314 = vunpack.c.h.b16 %v2141
    %v2315 = vunpack.c.l.b16 %v2142
    %v2316 = vunpack.c.h.b16 %v2142
    %v2317 = vunpack.c.l.b16 %v2143
    %v2318 = vunpack.c.h.b16 %v2143
    %v2319 = vunpack.c.l.b16 %v2144
    %v2320 = vunpack.c.h.b16 %v2144
    %v2321 = vunpack.c.l.b16 %v2145
    %v2322 = vunpack.c.h.b16 %v2145
    %v2323 = vunpack.c.l.b16 %v2146
    %v2324 = vunpack.c.h.b16 %v2146
    %v2325 = vunpack.c.l.b16 %v2147
    %v2326 = vunpack.c.h.b16 %v2147
    %v2327 = vunpack.c.l.b16 %v2148
    %v2328 = vunpack.c.h.b16 %v2148
    %v2329 = vunpack.c.l.b16 %v2149
    %v2330 = vunpack.c.h.b16 %v2149
    %v2331 = vunpack.c.l.b16 %v2150
    %v2332 = vunpack.c.h.b16 %v2150
    %v2333 = vunpack.c.l.b16 %v2151
    %v2334 = vunpack.c.h.b16 %v2151
    %v2335 = vunpack.c.l.b16 %v2152
    %v2336 = vunpack.c.h.b16 %v2152
    %v2337 = vunpack.c.l.b16 %v2153
    %v2338 = vunpack.c.h.b16 %v2153
    %v2339 = vunpack.c.l.b16 %v2154
    %v2340 = vunpack.c.h.b16 %v2154
    %v2341 = vunpack.c.l.b16 %v2155
    %v2342 = vunpack.c.h.b16 %v2155
    %v2343 = vunpack.c.l.b16 %v2156
    %v2344 = vunpack.c.h.b16 %v2156
    %v2345 = vunpack.c.l.b16 %v2157
    %v2346 = vunpack.c.h.b16 %v2157
    %v2347 = vunpack.c.l.b16 %v2158
    %v2348 = vunpack.c.h.b16 %v2158
    %v2349 = vunpack.c.l.b16 %v2159
    %v2350 = vunpack.c.h.b16 %v2159
    %v2351 = vunpack.c.l.b16 %v2160
    %v2352 = vunpack.c.h.b16 %v2160
    %v2353 = vpack.c.b16 %v2229, %v2225
    %v2354 = vpack.c.b16 %v2230, %v2226
    %v2355 = vpack.c.b16 %v2231, %v2227
    %v2356 = vpack.c.b16 %v2232, %v2228
    %v2357 = vpack.c.b16 %v2237, %v2233
    %v2358 = vpack.c.b16 %v2238, %v2234
    %v2359 = vpack.c.b16 %v2239, %v2235
    %v2360 = vpack.c.b16 %v2240, %v2236
    %v2361 = vpack.c.b16 %v2245, %v2241
    %v2362 = vpack.c.b16 %v2246, %v2242
    %v2363 = vpack.c.b16 %v2247, %v2243
    %v2364 = vpack.c.b16 %v2248, %v2244
    %v2365 = vpack.c.b16 %v2253, %v2249
    %v2366 = vpack.c.b16 %v2254, %v2250
    %v2367 = vpack.c.b16 %v2255, %v2251
    %v2368 = vpack.c.b16 %v2256, %v2252
    %v2369 = vpack.c.b16 %v2261, %v2257
    %v2370 = vpack.c.b16 %v2262, %v2258
    %v2371 = vpack.c.b16 %v2263, %v2259
    %v2372 = vpack.c.b16 %v2264, %v2260
    %v2373 = vpack.c.b16 %v2269, %v2265
    %v2374 = vpack.c.b16 %v2270, %v2266
    %v2375 = vpack.c.b16 %v2271, %v2267
    %v2376 = vpack.c.b16 %v2272, %v2268
    %v2377 = vpack.c.b16 %v2277, %v2273
    %v2378 = vpack.c.b16 %v2278, %v2274
    %v2379 = vpack.c.b16 %v2279, %v2275
    %v2380 = vpack.c.b16 %v2280, %v2276
    %v2381 = vpack.c.b16 %v2285, %v2281
    %v2382 = vpack.c.b16 %v2286, %v2282
    %v2383 = vpack.c.b16 %v2287, %v2283
    %v2384 = vpack.c.b16 %v2288, %v2284
    %v2385 = vpack.c.b16 %v2293, %v2289
    %v2386 = vpack.c.b16 %v2294, %v2290
    %v2387 = vpack.c.b16 %v2295, %v2291
    %v2388 = vpack.c.b16 %v2296, %v2292
    %v2389 = vpack.c.b16 %v2301, %v2297
    %v2390 = vpack.c.b16 %v2302, %v2298
    %v2391 = vpack.c.b16 %v2303, %v2299
    %v2392 = vpack.c.b16 %v2304, %v2300
    %v2393 = vpack.c.b16 %v2309, %v2305
    %v2394 = vpack.c.b16 %v2310, %v2306
    %v2395 = vpack.c.b16 %v2311, %v2307
    %v2396 = vpack.c.b16 %v2312, %v2308
    %v2397 = vpack.c.b16 %v2317, %v2313
    %v2398 = vpack.c.b16 %v2318, %v2314
    %v2399 = vpack.c.b16 %v2319, %v2315
    %v2400 = vpack.c.b16 %v2320, %v2316
    %v2401 = vpack.c.b16 %v2325, %v2321
    %v2402 = vpack.c.b16 %v2326, %v2322
    %v2403 = vpack.c.b16 %v2327, %v2323
    %v2404 = vpack.c.b16 %v2328, %v2324
    %v2405 = vpack.c.b16 %v2333, %v2329
    %v2406 = vpack.c.b16 %v2334, %v2330
    %v2407 = vpack.c.b16 %v2335, %v2331
    %v2408 = vpack.c.b16 %v2336, %v2332
    %v2409 = vpack.c.b16 %v2341, %v2337
    %v2410 = vpack.c.b16 %v2342, %v2338
    %v2411 = vpack.c.b16 %v2343, %v2339
    %v2412 = vpack.c.b16 %v2344, %v2340
    %v2413 = vpack.c.b16 %v2349, %v2345
    %v2414 = vpack.c.b16 %v2350, %v2346
    %v2415 = vpack.c.b16 %v2351, %v2347
    %v2416 = vpack.c.b16 %v2352, %v2348
    %2481 = vmatpush.bf16.msra.mxu0 %v2381
    %2482 = vmatpush.bf16.msra.mxu0 %v2377
    %2483 = vmatpush.bf16.msra.mxu0 %v2373
    %2484 = vmatpush.bf16.msra.mxu0 %v2369
    %2485 = vmatpush.bf16.msra.mxu0 %v2365
    %2486 = vmatpush.bf16.msra.mxu0 %v2361
    %2487 = vmatpush.bf16.msra.mxu0 %v2357
    %2488 = vmatpush.bf16.msra.mxu0 %v2353
    %2489 = vmatmul.bf16.gmra.mxu0 %v2095
    %v2490 = vpop.f32.mrf.mxu0
    %v2491 = vadd.f32 0.0, %v2490
    %v2492 = vpop.f32.mrf.mxu0
    %2493 = vdwg.mxu0
    %2494 = vmatpush.bf16.msra.mxu0 %v2413
    %2495 = vmatpush.bf16.msra.mxu0 %v2409
    %2496 = vmatpush.bf16.msra.mxu0 %v2405
    %2497 = vmatpush.bf16.msra.mxu0 %v2401
    %2498 = vmatpush.bf16.msra.mxu0 %v2397
    %2499 = vmatpush.bf16.msra.mxu0 %v2393
    %2500 = vmatpush.bf16.msra.mxu0 %v2389
    %2501 = vmatpush.bf16.msra.mxu0 %v2385
    %2502 = vmatmul.bf16.gmra.mxu0 %v2096
    %v2503 = vpop.f32.mrf.mxu0
    %v2504 = vadd.f32 %v2491, %v2503
    %v2505 = vpop.f32.mrf.mxu0
    %2506 = vdwg.mxu0
    %2507 = vmatpush.bf16.msra.mxu0 %v2382
    %2508 = vmatpush.bf16.msra.mxu0 %v2378
    %2509 = vmatpush.bf16.msra.mxu0 %v2374
    %2510 = vmatpush.bf16.msra.mxu0 %v2370
    %2511 = vmatpush.bf16.msra.mxu0 %v2366
    %2512 = vmatpush.bf16.msra.mxu0 %v2362
    %2513 = vmatpush.bf16.msra.mxu0 %v2358
    %2514 = vmatpush.bf16.msra.mxu0 %v2354
    %2515 = vmatmul.bf16.gmra.mxu0 %v2095
    %v2516 = vpop.f32.mrf.mxu0
    %v2517 = vadd.f32 0.0, %v2516
    %v2518 = vpop.f32.mrf.mxu0
    %2519 = vdwg.mxu0
    %2520 = vmatpush.bf16.msra.mxu0 %v2414
    %2521 = vmatpush.bf16.msra.mxu0 %v2410
    %2522 = vmatpush.bf16.msra.mxu0 %v2406
    %2523 = vmatpush.bf16.msra.mxu0 %v2402
    %2524 = vmatpush.bf16.msra.mxu0 %v2398
    %2525 = vmatpush.bf16.msra.mxu0 %v2394
    %2526 = vmatpush.bf16.msra.mxu0 %v2390
    %2527 = vmatpush.bf16.msra.mxu0 %v2386
    %2528 = vmatmul.bf16.gmra.mxu0 %v2096
    %v2529 = vpop.f32.mrf.mxu0
    %v2530 = vadd.f32 %v2517, %v2529
    %v2531 = vpop.f32.mrf.mxu0
    %2532 = vdwg.mxu0
    %2533 = vmatpush.bf16.msra.mxu0 %v2383
    %2534 = vmatpush.bf16.msra.mxu0 %v2379
    %2535 = vmatpush.bf16.msra.mxu0 %v2375
    %2536 = vmatpush.bf16.msra.mxu0 %v2371
    %2537 = vmatpush.bf16.msra.mxu0 %v2367
    %2538 = vmatpush.bf16.msra.mxu0 %v2363
    %2539 = vmatpush.bf16.msra.mxu0 %v2359
    %2540 = vmatpush.bf16.msra.mxu0 %v2355
    %2541 = vmatmul.bf16.gmra.mxu0 %v2095
    %v2542 = vpop.f32.mrf.mxu0
    %v2543 = vadd.f32 0.0, %v2542
    %v2544 = vpop.f32.mrf.mxu0
    %2545 = vdwg.mxu0
    %2546 = vmatpush.bf16.msra.mxu0 %v2415
    %2547 = vmatpush.bf16.msra.mxu0 %v2411
    %2548 = vmatpush.bf16.msra.mxu0 %v2407
    %2549 = vmatpush.bf16.msra.mxu0 %v2403
    %2550 = vmatpush.bf16.msra.mxu0 %v2399
    %2551 = vmatpush.bf16.msra.mxu0 %v2395
    %2552 = vmatpush.bf16.msra.mxu0 %v2391
    %2553 = vmatpush.bf16.msra.mxu0 %v2387
    %2554 = vmatmul.bf16.gmra.mxu0 %v2096
    %v2555 = vpop.f32.mrf.mxu0
    %v2556 = vadd.f32 %v2543, %v2555
    %v2557 = vpop.f32.mrf.mxu0
    %2558 = vdwg.mxu0
    %2559 = vmatpush.bf16.msra.mxu0 %v2384
    %2560 = vmatpush.bf16.msra.mxu0 %v2380
    %2561 = vmatpush.bf16.msra.mxu0 %v2376
    %2562 = vmatpush.bf16.msra.mxu0 %v2372
    %2563 = vmatpush.bf16.msra.mxu0 %v2368
    %2564 = vmatpush.bf16.msra.mxu0 %v2364
    %2565 = vmatpush.bf16.msra.mxu0 %v2360
    %2566 = vmatpush.bf16.msra.mxu0 %v2356
    %2567 = vmatmul.bf16.gmra.mxu0 %v2095
    %v2568 = vpop.f32.mrf.mxu0
    %v2569 = vadd.f32 0.0, %v2568
    %v2570 = vpop.f32.mrf.mxu0
    %2571 = vdwg.mxu0
    %2572 = vmatpush.bf16.msra.mxu0 %v2416
    %2573 = vmatpush.bf16.msra.mxu0 %v2412
    %2574 = vmatpush.bf16.msra.mxu0 %v2408
    %2575 = vmatpush.bf16.msra.mxu0 %v2404
    %2576 = vmatpush.bf16.msra.mxu0 %v2400
    %2577 = vmatpush.bf16.msra.mxu0 %v2396
    %2578 = vmatpush.bf16.msra.mxu0 %v2392
    %2579 = vmatpush.bf16.msra.mxu0 %v2388
    %2580 = vmatmul.bf16.gmra.mxu0 %v2096
    %v2581 = vpop.f32.mrf.mxu0
    %v2582 = vadd.f32 %v2569, %v2581
    %v2583 = vpop.f32.mrf.mxu0
    %2584 = vdwg.mxu0
    %v2585 = vadd.f32 %v1961, %v2504
    %v2586 = vadd.f32 %v1962, %v2530
    %v2587 = vadd.f32 %v1963, %v2556
    %v2588 = vadd.f32 %v1964, %v2582
    %v2589 = vld [vmem:[%s4] sm:$0xf]
    %v2591 = vperm.slane %v2589, 0
    %v2592 = vperm.slane %v2589, 1
    %v2593 = vperm.slane %v2589, 2
    %v2594 = vperm.slane %v2589, 3
    %v2599 = vadd.f32 %v2585, %v2591
    %v2600 = vadd.f32 %v2586, %v2592
    %v2601 = vadd.f32 %v2587, %v2593
    %v2602 = vadd.f32 %v2588, %v2594
    %v2603 = vmax.f32 %v2599, 0.0
    %v2604 = vmax.f32 %v2600, 0.0
    %v2605 = vmax.f32 %v2601, 0.0
    %v2606 = vmax.f32 %v2602, 0.0
    %v2607 = vld [vmem:[#allocation10] sm:$0xf]
    %v2609 = vperm.slane %v2607, 0
    %v2610 = vperm.slane %v2607, 1
    %v2611 = vperm.slane %v2607, 2
    %v2612 = vperm.slane %v2607, 3
    %v2617 = vmul.f32 %v2603, %v2609
    %v2618 = vmul.f32 %v2604, %v2610
    %v2619 = vmul.f32 %v2605, %v2611
    %v2620 = vmul.f32 %v2606, %v2612
    %v2621 = vadd.f32 %v2617, %v2618
    %v2622 = vadd.f32 %v2621, %v2619
    %v2623 = vadd.f32 %v2622, %v2620
    %2624 = vadd.xlane.f32.xlu0 %v2623
    %v2625 = vpop.xlane.xlu0 %2624
    %v2626 = vld [vmem:[#allocation2] sm:$0x1]
    %v2628 = vperm.slane %v2626, 0
    %v2630 = vadd.f32 %v2625, %v2628
    %vm2631 = vcmask 7168
    %2632 = vst.msk [vmem:[%s7] sm:$0xff] %vm2631, %v2630
    // Predicated region
    $region50: #{tpu_custom_call.1} parent=1 // pred_check
      _
    $region51: #{tpu_custom_call.1} parent=1 // pred_check_branch
      %2634 = sbr.rel (0) target = $region53
    $region52: #{tpu_custom_call.1} parent=1 // pred_region
      _
    $region53: #{tpu_custom_call.1} parent=1 // pred_fallthru
      _
    // Predicated region
    $region54: #{tpu_custom_call.1} parent=1 // pred_check
      _
    $region55: #{tpu_custom_call.1} parent=1 // pred_check_branch
      %2636 = sbr.rel (0) target = $region57
    $region56: #{tpu_custom_call.1} parent=1 // pred_region
      _
    $region57: #{tpu_custom_call.1} parent=1 // pred_fallthru
      _
    %2637 = vsyncpa [#allocation4], 1
    %2638 = vsyncpa [#allocation6], 1
    %2639 = vsyncpa [#allocation9], 1

</llo_original>
